<compile_context>
chip_gen: v7x
topology: tpu7x:2x2x1
jax: 0.10.0
libtpu: 0.0.40
codegen_flags: <defaults>
</compile_context>

<pallas_src>
import jax
import jax.numpy as jnp
from jax.experimental import pallas as pl
from jax.experimental.pallas import tpu as pltpu

IN_DIM = 3 * 28 * 28        # 2352
HID = 100
NUM_CLASSES = 10
HID_PAD = 128               # lane-dense hidden width
CLS_PAD = 128               # lane-dense class width


def _round_up(n, m):
    return ((n + m - 1) // m) * m


# ----------------------------------------------------------------------------- kernel
def _lff_kernel(x_ref, w1_ref, b1_ref, w2_ref, b2_ref, w3_ref, b3_ref,
                wc_ref, bc_ref,
                fc1_ref, fc2_ref, fc3_ref, logits_ref):
    # x arrives as float32 (no wrapper-side cast pass over HBM); cast to bf16
    # here -- the VPU cast is hidden under the much larger x DMA.
    x = x_ref[...].astype(jnp.bfloat16)                       # (TM, IN_DIM)

    # fc1 + ReLU  (bf16 MXU inputs, f32 accumulate)
    h1 = jnp.maximum(
        jnp.dot(x, w1_ref[...], preferred_element_type=jnp.float32) + b1_ref[...],
        0.0)
    h1b = h1.astype(jnp.bfloat16)
    fc1_ref[...] = h1b                                        # bf16 writeback

    # fc2 + ReLU
    h2 = jnp.maximum(
        jnp.dot(h1b, w2_ref[...], preferred_element_type=jnp.float32) + b2_ref[...],
        0.0)
    h2b = h2.astype(jnp.bfloat16)
    fc2_ref[...] = h2b

    # fc3 + ReLU
    h3 = jnp.maximum(
        jnp.dot(h2b, w3_ref[...], preferred_element_type=jnp.float32) + b3_ref[...],
        0.0)
    h3b = h3.astype(jnp.bfloat16)
    fc3_ref[...] = h3b

    # classifier (no activation) -- logits stay float32
    logits_ref[...] = (
        jnp.dot(h3b, wc_ref[...], preferred_element_type=jnp.float32) + bc_ref[...])


# ----------------------------------------------------------------------------- tiling
def _choose_tile(B):
    """Pick (TM, B_pad).

    Cost model: each padded batch row costs one full row of HBM traffic
    (~10.4 KB: f32 x + bf16/f32 outputs), each grid step costs ~0.35 us of
    fixed pipeline overhead (~350 KB of HBM time at ~1 TB/s). When B >= 16,
    cap TM at ~B/2 so there are always >= 2 grid steps and the "parallel"
    batch axis can shard across both v7x TensorCores.
    """
    B8 = _round_up(max(B, 1), 8)                       # f32 sublane alignment
    row_bytes = IN_DIM * 4 + 3 * HID_PAD * 2 + CLS_PAD * 4
    step_bytes = 350 * 1024
    cap = B8 if B8 < 16 else max(8, (B8 // 2) // 8 * 8)
    best = None
    for tm in (1024, 512, 256, 128, 64, 32, 16, 8):
        if tm > cap:
            continue
        b_pad = _round_up(B8, tm)
        steps = b_pad // tm
        cost = (b_pad - B) * row_bytes + steps * step_bytes
        if best is None or cost < best[0]:
            best = (cost, tm, b_pad)
    _, tm, b_pad = best
    return tm, b_pad


def _vmem_bytes(tm):
    """Rough VMEM footprint of the pipelined blocks (inputs/outputs are
    double-buffered by Pallas; weights are resident but still 2-buffered)."""
    x_blk = tm * IN_DIM * 4                                        # f32 x block
    w_bytes = (IN_DIM * HID_PAD + 2 * HID_PAD * HID_PAD + HID_PAD * CLS_PAD) * 2
    b_bytes = (3 * HID_PAD + CLS_PAD) * 4
    out_blk = tm * (3 * HID_PAD * 2 + CLS_PAD * 4)                 # bf16 + f32
    return 2 * (x_blk + out_blk) + 2 * (w_bytes + b_bytes)


# ----------------------------------------------------------------------------- params
def _pad_and_cast_params(params):
    """Zero-pad feature dims to 128-lane multiples; weights -> bf16, biases -> f32."""
    w1, b1, w2, b2, w3, b3, wc, bc = params

    def pad_w(w, in_pad, out_pad):
        fan_in, fan_out = w.shape
        wp = jnp.zeros((in_pad, out_pad), jnp.float32).at[:fan_in, :fan_out].set(w)
        return wp.astype(jnp.bfloat16)

    def pad_b(b, out_pad):
        return jnp.zeros((1, out_pad), jnp.float32).at[:, :b.shape[1]].set(b)

    return (
        pad_w(w1, IN_DIM, HID_PAD),   pad_b(b1, HID_PAD),
        pad_w(w2, HID_PAD, HID_PAD),  pad_b(b2, HID_PAD),
        pad_w(w3, HID_PAD, HID_PAD),  pad_b(b3, HID_PAD),
        pad_w(wc, HID_PAD, CLS_PAD),  pad_b(bc, CLS_PAD),
    )


# ----------------------------------------------------------------------------- wrapper
def lff_mnist_classifier_forward(x, params):
    """x: (B, 3, 28, 28) float32. Returns dict matching the PyTorch module."""
    B = x.shape[0]
    # Row-major flatten == torch's x.view(x.size(0), -1); no copy for NCHW.
    x_flat = x.reshape(B, -1).astype(jnp.float32)              # (B, 2352) f32

    TM, B_pad = _choose_tile(B)
    if B_pad != B:                                             # usually a no-op
        x_flat = jnp.pad(x_flat, ((0, B_pad - B), (0, 0)))

    (w1, b1, w2, b2, w3, b3, wc, bc) = _pad_and_cast_params(params)

    grid = (B_pad // TM,)

    # x / outputs walk the batch axis; weights & biases stay on block (0, 0)
    # so Pallas keeps them VMEM-resident (no re-DMA across grid steps).
    x_spec = pl.BlockSpec((TM, IN_DIM), lambda i: (i, 0))
    resident = lambda shape: pl.BlockSpec(shape, lambda i: (0, 0))
    out_hid_spec = pl.BlockSpec((TM, HID_PAD), lambda i: (i, 0))
    out_cls_spec = pl.BlockSpec((TM, CLS_PAD), lambda i: (i, 0))

    in_specs = [
        x_spec,
        resident((IN_DIM, HID_PAD)),  resident((1, HID_PAD)),
        resident((HID_PAD, HID_PAD)), resident((1, HID_PAD)),
        resident((HID_PAD, HID_PAD)), resident((1, HID_PAD)),
        resident((HID_PAD, CLS_PAD)), resident((1, CLS_PAD)),
    ]
    out_specs = (out_hid_spec, out_hid_spec, out_hid_spec, out_cls_spec)

    out_shapes = (
        jax.ShapeDtypeStruct((B_pad, HID_PAD), jnp.bfloat16),   # fc1 (bf16 writeback)
        jax.ShapeDtypeStruct((B_pad, HID_PAD), jnp.bfloat16),   # fc2
        jax.ShapeDtypeStruct((B_pad, HID_PAD), jnp.bfloat16),   # fc3
        jax.ShapeDtypeStruct((B_pad, CLS_PAD), jnp.float32),    # logits
    )

    # Raise the scoped-VMEM cap only when the chosen tile needs it
    # (v5e default scoped VMEM is 16 MiB; v6e/v7x default 32 MiB).
    vmem_est = _vmem_bytes(TM)
    vmem_limit = min(48 << 20, 2 * vmem_est) if vmem_est > (12 << 20) else None

    fc1, fc2, fc3, logits = pl.pallas_call(
        _lff_kernel,
        out_shape=out_shapes,
        grid=grid,
        in_specs=in_specs,
        out_specs=out_specs,
        compiler_params=pltpu.CompilerParams(
            dimension_semantics=("parallel",),     # megacore sharding on v7x
            vmem_limit_bytes=vmem_limit),
    )(x_flat, w1, b1, w2, b2, w3, b3, wc, bc)

    # Slice back to unpadded module shapes. These post-passes are over tiny
    # (B, 128) bf16 arrays (~2.5% of the kernel's HBM traffic); the bf16->f32
    # cast fuses with the slice into a single XLA pass.
    fc1 = fc1[:B, :HID].astype(jnp.float32)
    fc2 = fc2[:B, :HID].astype(jnp.float32)
    fc3 = fc3[:B, :HID].astype(jnp.float32)
    logits = logits[:B, :NUM_CLASSES]

    return {
        'fc1': fc1,
        'fc2': fc2,
        'fc3': fc3,
        'before_logits': fc3,   # post-ReLU fc3, matching the PyTorch forward
        'logits': logits,
    }


def init_params(key):
    """Deterministic init mimicking nn.Linear default
    (uniform(-1/sqrt(fan_in), 1/sqrt(fan_in))). Weights stored (in, out) f32,
    biases (1, out) f32; padding / bf16 cast happens in the wrapper."""
    def linear(key, fan_in, fan_out):
        kw, kb = jax.random.split(key)
        bound = 1.0 / jnp.sqrt(fan_in)
        w = jax.random.uniform(kw, (fan_in, fan_out), jnp.float32, -bound, bound)
        b = jax.random.uniform(kb, (1, fan_out), jnp.float32, -bound, bound)
        return w, b

    k1, k2, k3, kc = jax.random.split(key, 4)
    w1, b1 = linear(k1, IN_DIM, HID)
    w2, b2 = linear(k2, HID, HID)
    w3, b3 = linear(k3, HID, HID)
    wc, bc = linear(kc, HID, NUM_CLASSES)
    # NOTE: self.feature in the PyTorch module is never used by forward(), so
    # its parameters are intentionally not materialized here.
    return (w1, b1, w2, b2, w3, b3, wc, bc)


if __name__ == "__main__":
    key = jax.random.PRNGKey(0)
    k_params, k_x = jax.random.split(key)

    params = init_params(k_params)
    x = jax.random.normal(k_x, (2, 3, 28, 28), dtype=jnp.float32)  # NCHW, batch=2

    out = lff_mnist_classifier_forward(x, params)
    jax.block_until_ready(out)

    # sanity: shapes match the PyTorch module's outputs
    assert out['fc1'].shape == (2, HID)
    assert out['fc2'].shape == (2, HID)
    assert out['fc3'].shape == (2, HID)
    assert out['before_logits'].shape == (2, HID)
    assert out['logits'].shape == (2, NUM_CLASSES)

    print("KERNEL_OK")
</pallas_src>

<mosaic_0001>
module attributes {stable_mosaic.version = 11 : i64} {
  func.func @_lff_kernel(%arg0: i32, %arg1: memref<8x2352xf32, #tpu.memory_space<vmem>>, %arg2: memref<2352x128xbf16, #tpu.memory_space<vmem>>, %arg3: memref<1x128xf32, #tpu.memory_space<vmem>>, %arg4: memref<128x128xbf16, #tpu.memory_space<vmem>>, %arg5: memref<1x128xf32, #tpu.memory_space<vmem>>, %arg6: memref<128x128xbf16, #tpu.memory_space<vmem>>, %arg7: memref<1x128xf32, #tpu.memory_space<vmem>>, %arg8: memref<128x128xbf16, #tpu.memory_space<vmem>>, %arg9: memref<1x128xf32, #tpu.memory_space<vmem>>, %arg10: memref<8x128xbf16, #tpu.memory_space<vmem>>, %arg11: memref<8x128xbf16, #tpu.memory_space<vmem>>, %arg12: memref<8x128xbf16, #tpu.memory_space<vmem>>, %arg13: memref<8x128xf32, #tpu.memory_space<vmem>>) attributes {dimension_semantics = [#tpu.dimension_semantics<parallel>], iteration_bounds = array<i64: 1>, scalar_prefetch = 0 : i64, scratch_operands = 0 : i64, tpu.core_type = #tpu.core_type<tc>, window_params = [{transform_indices = @transform_0, window_bounds = array<i64: 8, 2352>}, {pipeline_mode = #tpu.pipeline_mode<synchronous>, transform_indices = @transform_1, window_bounds = array<i64: 2352, 128>}, {pipeline_mode = #tpu.pipeline_mode<synchronous>, transform_indices = @transform_2, window_bounds = array<i64: 1, 128>}, {pipeline_mode = #tpu.pipeline_mode<synchronous>, transform_indices = @transform_3, window_bounds = array<i64: 128, 128>}, {pipeline_mode = #tpu.pipeline_mode<synchronous>, transform_indices = @transform_4, window_bounds = array<i64: 1, 128>}, {pipeline_mode = #tpu.pipeline_mode<synchronous>, transform_indices = @transform_5, window_bounds = array<i64: 128, 128>}, {pipeline_mode = #tpu.pipeline_mode<synchronous>, transform_indices = @transform_6, window_bounds = array<i64: 1, 128>}, {pipeline_mode = #tpu.pipeline_mode<synchronous>, transform_indices = @transform_7, window_bounds = array<i64: 128, 128>}, {pipeline_mode = #tpu.pipeline_mode<synchronous>, transform_indices = @transform_8, window_bounds = array<i64: 1, 128>}, {transform_indices = @transform_9, window_bounds = array<i64: 8, 128>}, {transform_indices = @transform_10, window_bounds = array<i64: 8, 128>}, {transform_indices = @transform_11, window_bounds = array<i64: 8, 128>}, {transform_indices = @transform_12, window_bounds = array<i64: 8, 128>}]} {
    %c0 = arith.constant 0 : index
    %c0_0 = arith.constant 0 : index
    %0 = vector.load %arg1[%c0, %c0_0] : memref<8x2352xf32, #tpu.memory_space<vmem>>, vector<8x2352xf32>
    %1 = arith.truncf %0 : vector<8x2352xf32> to vector<8x2352xbf16>
    %c0_1 = arith.constant 0 : index
    %c0_2 = arith.constant 0 : index
    %2 = vector.load %arg2[%c0_1, %c0_2] : memref<2352x128xbf16, #tpu.memory_space<vmem>>, vector<2352x128xbf16>
    %cst = arith.constant dense<0.000000e+00> : vector<8x128xf32>
    %3 = tpu.matmul %1, %2, %cst {dimension_numbers = #tpu.dot_dimension_numbers<[1], [0], [0], [1], [0, 0, 1, 1], [], []>} : vector<8x2352xbf16>, vector<2352x128xbf16>, vector<8x128xf32> -> vector<8x128xf32>
    %c0_3 = arith.constant 0 : index
    %c0_4 = arith.constant 0 : index
    %4 = vector.load %arg3[%c0_3, %c0_4] : memref<1x128xf32, #tpu.memory_space<vmem>>, vector<1x128xf32>
    %5 = vector.broadcast %4 : vector<1x128xf32> to vector<8x128xf32>
    %6 = arith.addf %3, %5 : vector<8x128xf32>
    %cst_5 = arith.constant 0.000000e+00 : f32
    %7 = vector.broadcast %cst_5 : f32 to vector<8x128xf32>
    %8 = arith.maximumf %6, %7 : vector<8x128xf32>
    %9 = arith.truncf %8 : vector<8x128xf32> to vector<8x128xbf16>
    %c0_6 = arith.constant 0 : index
    %c0_7 = arith.constant 0 : index
    %10 = vector.load %arg10[%c0_6, %c0_7] : memref<8x128xbf16, #tpu.memory_space<vmem>>, vector<8x128xbf16>
    tpu.vector_store %arg10[%c0_6, %c0_7], %9 {strides = array<i32>} : memref<8x128xbf16, #tpu.memory_space<vmem>>, vector<8x128xbf16>,
    %c0_8 = arith.constant 0 : index
    %c0_9 = arith.constant 0 : index
    %11 = vector.load %arg4[%c0_8, %c0_9] : memref<128x128xbf16, #tpu.memory_space<vmem>>, vector<128x128xbf16>
    %cst_10 = arith.constant dense<0.000000e+00> : vector<8x128xf32>
    %12 = tpu.matmul %9, %11, %cst_10 {dimension_numbers = #tpu.dot_dimension_numbers<[1], [0], [0], [1], [0, 0, 1, 1], [], []>} : vector<8x128xbf16>, vector<128x128xbf16>, vector<8x128xf32> -> vector<8x128xf32>
    %c0_11 = arith.constant 0 : index
    %c0_12 = arith.constant 0 : index
    %13 = vector.load %arg5[%c0_11, %c0_12] : memref<1x128xf32, #tpu.memory_space<vmem>>, vector<1x128xf32>
    %14 = vector.broadcast %13 : vector<1x128xf32> to vector<8x128xf32>
    %15 = arith.addf %12, %14 : vector<8x128xf32>
    %cst_13 = arith.constant 0.000000e+00 : f32
    %16 = vector.broadcast %cst_13 : f32 to vector<8x128xf32>
    %17 = arith.maximumf %15, %16 : vector<8x128xf32>
    %18 = arith.truncf %17 : vector<8x128xf32> to vector<8x128xbf16>
    %c0_14 = arith.constant 0 : index
    %c0_15 = arith.constant 0 : index
    %19 = vector.load %arg11[%c0_14, %c0_15] : memref<8x128xbf16, #tpu.memory_space<vmem>>, vector<8x128xbf16>
    tpu.vector_store %arg11[%c0_14, %c0_15], %18 {strides = array<i32>} : memref<8x128xbf16, #tpu.memory_space<vmem>>, vector<8x128xbf16>,
    %c0_16 = arith.constant 0 : index
    %c0_17 = arith.constant 0 : index
    %20 = vector.load %arg6[%c0_16, %c0_17] : memref<128x128xbf16, #tpu.memory_space<vmem>>, vector<128x128xbf16>
    %cst_18 = arith.constant dense<0.000000e+00> : vector<8x128xf32>
    %21 = tpu.matmul %18, %20, %cst_18 {dimension_numbers = #tpu.dot_dimension_numbers<[1], [0], [0], [1], [0, 0, 1, 1], [], []>} : vector<8x128xbf16>, vector<128x128xbf16>, vector<8x128xf32> -> vector<8x128xf32>
    %c0_19 = arith.constant 0 : index
    %c0_20 = arith.constant 0 : index
    %22 = vector.load %arg7[%c0_19, %c0_20] : memref<1x128xf32, #tpu.memory_space<vmem>>, vector<1x128xf32>
    %23 = vector.broadcast %22 : vector<1x128xf32> to vector<8x128xf32>
    %24 = arith.addf %21, %23 : vector<8x128xf32>
    %cst_21 = arith.constant 0.000000e+00 : f32
    %25 = vector.broadcast %cst_21 : f32 to vector<8x128xf32>
    %26 = arith.maximumf %24, %25 : vector<8x128xf32>
    %27 = arith.truncf %26 : vector<8x128xf32> to vector<8x128xbf16>
    %c0_22 = arith.constant 0 : index
    %c0_23 = arith.constant 0 : index
    %28 = vector.load %arg12[%c0_22, %c0_23] : memref<8x128xbf16, #tpu.memory_space<vmem>>, vector<8x128xbf16>
    tpu.vector_store %arg12[%c0_22, %c0_23], %27 {strides = array<i32>} : memref<8x128xbf16, #tpu.memory_space<vmem>>, vector<8x128xbf16>,
    %c0_24 = arith.constant 0 : index
    %c0_25 = arith.constant 0 : index
    %29 = vector.load %arg8[%c0_24, %c0_25] : memref<128x128xbf16, #tpu.memory_space<vmem>>, vector<128x128xbf16>
    %cst_26 = arith.constant dense<0.000000e+00> : vector<8x128xf32>
    %30 = tpu.matmul %27, %29, %cst_26 {dimension_numbers = #tpu.dot_dimension_numbers<[1], [0], [0], [1], [0, 0, 1, 1], [], []>} : vector<8x128xbf16>, vector<128x128xbf16>, vector<8x128xf32> -> vector<8x128xf32>
    %c0_27 = arith.constant 0 : index
    %c0_28 = arith.constant 0 : index
    %31 = vector.load %arg9[%c0_27, %c0_28] : memref<1x128xf32, #tpu.memory_space<vmem>>, vector<1x128xf32>
    %32 = vector.broadcast %31 : vector<1x128xf32> to vector<8x128xf32>
    %33 = arith.addf %30, %32 : vector<8x128xf32>
    %c0_29 = arith.constant 0 : index
    %c0_30 = arith.constant 0 : index
    %34 = vector.load %arg13[%c0_29, %c0_30] : memref<8x128xf32, #tpu.memory_space<vmem>>, vector<8x128xf32>
    tpu.vector_store %arg13[%c0_29, %c0_30], %33 {strides = array<i32>} : memref<8x128xf32, #tpu.memory_space<vmem>>, vector<8x128xf32>,
    return
  }
  func.func @transform_0(%arg0: i32) -> (i32, i32) {
    %c0_i32 = arith.constant 0 : i32
    %c0_i32_0 = arith.constant 0 : i32
    return %arg0, %c0_i32 : i32, i32
  }
  func.func @transform_1(%arg0: i32) -> (i32, i32) {
    %c0_i32 = arith.constant 0 : i32
    %c0_i32_0 = arith.constant 0 : i32
    %c0_i32_1 = arith.constant 0 : i32
    return %c0_i32, %c0_i32_0 : i32, i32
  }
  func.func @transform_2(%arg0: i32) -> (i32, i32) {
    %c0_i32 = arith.constant 0 : i32
    %c0_i32_0 = arith.constant 0 : i32
    %c0_i32_1 = arith.constant 0 : i32
    return %c0_i32, %c0_i32_0 : i32, i32
  }
  func.func @transform_3(%arg0: i32) -> (i32, i32) {
    %c0_i32 = arith.constant 0 : i32
    %c0_i32_0 = arith.constant 0 : i32
    %c0_i32_1 = arith.constant 0 : i32
    return %c0_i32, %c0_i32_0 : i32, i32
  }
  func.func @transform_4(%arg0: i32) -> (i32, i32) {
    %c0_i32 = arith.constant 0 : i32
    %c0_i32_0 = arith.constant 0 : i32
    %c0_i32_1 = arith.constant 0 : i32
    return %c0_i32, %c0_i32_0 : i32, i32
  }
  func.func @transform_5(%arg0: i32) -> (i32, i32) {
    %c0_i32 = arith.constant 0 : i32
    %c0_i32_0 = arith.constant 0 : i32
    %c0_i32_1 = arith.constant 0 : i32
    return %c0_i32, %c0_i32_0 : i32, i32
  }
  func.func @transform_6(%arg0: i32) -> (i32, i32) {
    %c0_i32 = arith.constant 0 : i32
    %c0_i32_0 = arith.constant 0 : i32
    %c0_i32_1 = arith.constant 0 : i32
    return %c0_i32, %c0_i32_0 : i32, i32
  }
  func.func @transform_7(%arg0: i32) -> (i32, i32) {
    %c0_i32 = arith.constant 0 : i32
    %c0_i32_0 = arith.constant 0 : i32
    %c0_i32_1 = arith.constant 0 : i32
    return %c0_i32, %c0_i32_0 : i32, i32
  }
  func.func @transform_8(%arg0: i32) -> (i32, i32) {
    %c0_i32 = arith.constant 0 : i32
    %c0_i32_0 = arith.constant 0 : i32
    %c0_i32_1 = arith.constant 0 : i32
    return %c0_i32, %c0_i32_0 : i32, i32
  }
  func.func @transform_9(%arg0: i32) -> (i32, i32) {
    %c0_i32 = arith.constant 0 : i32
    %c0_i32_0 = arith.constant 0 : i32
    return %arg0, %c0_i32 : i32, i32
  }
  func.func @transform_10(%arg0: i32) -> (i32, i32) {
    %c0_i32 = arith.constant 0 : i32
    %c0_i32_0 = arith.constant 0 : i32
    return %arg0, %c0_i32 : i32, i32
  }
  func.func @transform_11(%arg0: i32) -> (i32, i32) {
    %c0_i32 = arith.constant 0 : i32
    %c0_i32_0 = arith.constant 0 : i32
    return %arg0, %c0_i32 : i32, i32
  }
  func.func @transform_12(%arg0: i32) -> (i32, i32) {
    %c0_i32 = arith.constant 0 : i32
    %c0_i32_0 = arith.constant 0 : i32
    return %arg0, %c0_i32 : i32, i32
  }
}

</mosaic_0001>

<llo_original>
// kernel: tpu_custom_call.1
$region0: #{tpu_custom_call.1}
  #allocation0 [shape = 'u32[]', space=smem, size = 0x4, offset = 0x4, fixed_abs, tag = 'smem constant byte address 0x4 - core index']
  #allocation1 [shape = 'u32[144,128]{1,0:T(1,128)}', space=vmem, size = 0x12000, scoped, tag = 'internal scratch']
  %s0 = inlined_call_operand.hbm [shape: f32[8,2352], index: 0, kind: input, shape index: {}]
  %s1 = inlined_call_operand.hbm [shape: bf16[2352,128], index: 1, kind: input, shape index: {}]
  %s2 = inlined_call_operand.vmem [shape: f32[1,128], index: 2, kind: input, shape index: {}]
  %s3 = inlined_call_operand.hbm [shape: bf16[128,128], index: 3, kind: input, shape index: {}]
  %s4 = inlined_call_operand.vmem [shape: f32[1,128], index: 4, kind: input, shape index: {}]
  %s5 = inlined_call_operand.hbm [shape: bf16[128,128], index: 5, kind: input, shape index: {}]
  %s6 = inlined_call_operand.vmem [shape: f32[1,128], index: 6, kind: input, shape index: {}]
  %s7 = inlined_call_operand.hbm [shape: bf16[128,128], index: 7, kind: input, shape index: {}]
  %s8 = inlined_call_operand.vmem [shape: f32[1,128], index: 8, kind: input, shape index: {}]
  %s9 = inlined_call_operand.hbm [shape: bf16[8,128], index: 9, kind: output, shape index: {0}]
  %s10 = inlined_call_operand.hbm [shape: bf16[8,128], index: 10, kind: output, shape index: {1}]
  %s11 = inlined_call_operand.hbm [shape: bf16[8,128], index: 11, kind: output, shape index: {2}]
  %s12 = inlined_call_operand.hbm [shape: f32[8,128], index: 12, kind: output, shape index: {3}]
  %13 = xla_tuple %s9, %s10, %s11, %s12
  %s14 = sld [smem:[#allocation0]]
  $region90: #{tpu_custom_call.1} parent=0
    _
  %s16 = ssub.s32 1, %s14
  %s17 = scalar_select 0, %s16, %s14
  $region1: #{tpu_custom_call.1} parent=0
    #allocation2 [shape = 'u8[77824]{0}', space=vmem, size = 0x13000, scoped, tag = 'input window, operand 0, single buffered']
    #allocation3 [shape = 's32[1]{0}', space=sflag, size = 0x4, scoped, tag = 'scoped memory for tpu_custom_call.1']
    #allocation4 [shape = 's32[1]{0}', space=sflag, size = 0x4, scoped, tag = 'scoped memory for tpu_custom_call.1']
    #allocation5 [shape = 'u8[602112]{0}', space=vmem, size = 0x93000, scoped, tag = 'input window, operand 1, single buffered']
    #allocation6 [shape = 's32[1]{0}', space=sflag, size = 0x4, scoped, tag = 'scoped memory for tpu_custom_call.1']
    #allocation7 [shape = 'u8[32768]{0}', space=vmem, size = 0x8000, scoped, tag = 'input window, operand 3, single buffered']
    #allocation8 [shape = 'u8[32768]{0}', space=vmem, size = 0x8000, scoped, tag = 'input window, operand 5, single buffered']
    #allocation9 [shape = 's32[1]{0}', space=sflag, size = 0x4, scoped, tag = 'scoped memory for tpu_custom_call.1']
    #allocation10 [shape = 'u8[32768]{0}', space=vmem, size = 0x8000, scoped, tag = 'input window, operand 7, single buffered']
    #allocation11 [shape = 'u8[2048]{0}', space=vmem, size = 0x800, scoped, tag = 'output window, operand 0, single buffered']
    #allocation12 [shape = 'u8[2048]{0}', space=vmem, size = 0x800, scoped, tag = 'output window, operand 1, single buffered']
    #allocation13 [shape = 's32[1]{0}', space=sflag, size = 0x4, scoped, tag = 'scoped memory for tpu_custom_call.1']
    #allocation14 [shape = 'u8[2048]{0}', space=vmem, size = 0x800, scoped, tag = 'output window, operand 2, single buffered']
    #allocation15 [shape = 'u8[4096]{0}', space=vmem, size = 0x1000, scoped, tag = 'output window, operand 3, single buffered']
    #allocation16 [shape = 's32[1]{0}', space=sflag, size = 0x4, scoped, tag = 'scoped memory for tpu_custom_call.1']
    %18 = vsyncpa [#allocation3], 0
    %19 = vsyncpa [#allocation6], 0
    %20 = vsyncpa [#allocation9], 0
    %21 = vsyncpa [#allocation4], 0
    %22 = vsyncpa [#allocation13], 0
    %23 = vsyncpa [#allocation16], 0
    // Predicated region
    $region2: #{tpu_custom_call.1} parent=1 // pred_check
      _
    $region3: #{tpu_custom_call.1} parent=1 // pred_check_branch
      %25 = sbr.rel (0) target = $region5
    $region4: #{tpu_custom_call.1} parent=1 // pred_region
      %s27 = ssub.s32 2432, 2432
      %28 = vsyncadd [#allocation3], %s27
      %s30 = sshll.u32 [#allocation2], 4
      %s31 = int_to_ptr.vmem [resolvable:$true] %s30
      %33 = dma.hbm_to_vmem [thread:$0]  %s0, 2432, %s31, [#allocation3]
    $region5: #{tpu_custom_call.1} parent=1 // pred_fallthru
      _
    // Predicated region
    $region6: #{tpu_custom_call.1} parent=1 // pred_check
      _
    $region7: #{tpu_custom_call.1} parent=1 // pred_check_branch
      %35 = sbr.rel (0) target = $region9
    $region8: #{tpu_custom_call.1} parent=1 // pred_region
      %s37 = ssub.s32 18816, 18816
      %38 = vsyncadd [#allocation6], %s37
      %s39 = sshll.u32 [#allocation5], 4
      %s40 = int_to_ptr.vmem [resolvable:$true] %s39
      %45 = dma.hbm_to_vmem [thread:$0]  %s1, 18816, %s40, [#allocation6], 64, 64, 4
    $region9: #{tpu_custom_call.1} parent=1 // pred_fallthru
      _
    // Predicated region
    $region10: #{tpu_custom_call.1} parent=1 // pred_check
      _
    $region11: #{tpu_custom_call.1} parent=1 // pred_check_branch
      %47 = sbr.rel (0) target = $region13
    $region12: #{tpu_custom_call.1} parent=1 // pred_region
      _
    $region13: #{tpu_custom_call.1} parent=1 // pred_fallthru
      _
    // Predicated region
    $region14: #{tpu_custom_call.1} parent=1 // pred_check
      _
    $region15: #{tpu_custom_call.1} parent=1 // pred_check_branch
      %49 = sbr.rel (0) target = $region17
    $region16: #{tpu_custom_call.1} parent=1 // pred_region
      %s51 = ssub.s32 1024, 1024
      %52 = vsyncadd [#allocation6], %s51
      %s53 = sshll.u32 [#allocation7], 4
      %s54 = int_to_ptr.vmem [resolvable:$true] %s53
      %59 = dma.hbm_to_vmem [thread:$0]  %s3, 1024, %s54, [#allocation6], 64, 64, 4
    $region17: #{tpu_custom_call.1} parent=1 // pred_fallthru
      _
    // Predicated region
    $region18: #{tpu_custom_call.1} parent=1 // pred_check
      _
    $region19: #{tpu_custom_call.1} parent=1 // pred_check_branch
      %61 = sbr.rel (0) target = $region21
    $region20: #{tpu_custom_call.1} parent=1 // pred_region
      _
    $region21: #{tpu_custom_call.1} parent=1 // pred_fallthru
      _
    // Predicated region
    $region22: #{tpu_custom_call.1} parent=1 // pred_check
      _
    $region23: #{tpu_custom_call.1} parent=1 // pred_check_branch
      %63 = sbr.rel (0) target = $region25
    $region24: #{tpu_custom_call.1} parent=1 // pred_region
      %s65 = ssub.s32 1024, 1024
      %66 = vsyncadd [#allocation9], %s65
      %s67 = sshll.u32 [#allocation8], 4
      %s68 = int_to_ptr.vmem [resolvable:$true] %s67
      %73 = dma.hbm_to_vmem [thread:$0]  %s5, 1024, %s68, [#allocation9], 64, 64, 4
    $region25: #{tpu_custom_call.1} parent=1 // pred_fallthru
      _
    // Predicated region
    $region26: #{tpu_custom_call.1} parent=1 // pred_check
      _
    $region27: #{tpu_custom_call.1} parent=1 // pred_check_branch
      %75 = sbr.rel (0) target = $region29
    $region28: #{tpu_custom_call.1} parent=1 // pred_region
      _
    $region29: #{tpu_custom_call.1} parent=1 // pred_fallthru
      _
    // Predicated region
    $region30: #{tpu_custom_call.1} parent=1 // pred_check
      _
    $region31: #{tpu_custom_call.1} parent=1 // pred_check_branch
      %77 = sbr.rel (0) target = $region33
    $region32: #{tpu_custom_call.1} parent=1 // pred_region
      %s79 = ssub.s32 1024, 1024
      %80 = vsyncadd [#allocation9], %s79
      %s81 = sshll.u32 [#allocation10], 4
      %s82 = int_to_ptr.vmem [resolvable:$true] %s81
      %87 = dma.hbm_to_vmem [thread:$0]  %s7, 1024, %s82, [#allocation9], 64, 64, 4
    $region33: #{tpu_custom_call.1} parent=1 // pred_fallthru
      _
    // Predicated region
    $region34: #{tpu_custom_call.1} parent=1 // pred_check
      _
    $region35: #{tpu_custom_call.1} parent=1 // pred_check_branch
      %89 = sbr.rel (0) target = $region37
    $region36: #{tpu_custom_call.1} parent=1 // pred_region
      _
    $region37: #{tpu_custom_call.1} parent=1 // pred_fallthru
      _
    // Predicated region
    $region38: #{tpu_custom_call.1} parent=1 // pred_check
      _
    $region39: #{tpu_custom_call.1} parent=1 // pred_check_branch
      %91 = sbr.rel (0) target = $region41
    $region40: #{tpu_custom_call.1} parent=1 // pred_region
      %92 = dma.done [#allocation3], 2432
    $region41: #{tpu_custom_call.1} parent=1 // pred_fallthru
      _
    // Predicated region
    $region42: #{tpu_custom_call.1} parent=1 // pred_check
      _
    $region43: #{tpu_custom_call.1} parent=1 // pred_check_branch
      %94 = sbr.rel (0) target = $region45
    $region44: #{tpu_custom_call.1} parent=1 // pred_region
      %95 = dma.done [#allocation6], 18816
    $region45: #{tpu_custom_call.1} parent=1 // pred_fallthru
      _
    // Predicated region
    $region46: #{tpu_custom_call.1} parent=1 // pred_check
      _
    $region47: #{tpu_custom_call.1} parent=1 // pred_check_branch
      %97 = sbr.rel (0) target = $region49
    $region48: #{tpu_custom_call.1} parent=1 // pred_region
      %98 = dma.done [#allocation6], 1024
    $region49: #{tpu_custom_call.1} parent=1 // pred_fallthru
      _
    // Predicated region
    $region50: #{tpu_custom_call.1} parent=1 // pred_check
      _
    $region51: #{tpu_custom_call.1} parent=1 // pred_check_branch
      %100 = sbr.rel (0) target = $region53
    $region52: #{tpu_custom_call.1} parent=1 // pred_region
      %101 = dma.done [#allocation9], 1024
    $region53: #{tpu_custom_call.1} parent=1 // pred_fallthru
      _
    // Predicated region
    $region54: #{tpu_custom_call.1} parent=1 // pred_check
      _
    $region55: #{tpu_custom_call.1} parent=1 // pred_check_branch
      %103 = sbr.rel (0) target = $region57
    $region56: #{tpu_custom_call.1} parent=1 // pred_region
      %104 = dma.done [#allocation9], 1024
    $region57: #{tpu_custom_call.1} parent=1 // pred_fallthru
      _
    %v106 = vld [vmem:[#allocation2] sm:$0xff]
    %v107 = vld [vmem:[#allocation2 + $0x8] sm:$0xff]
    %v108 = vld [vmem:[#allocation2 + $0x10] sm:$0xff]
    %v109 = vld [vmem:[#allocation2 + $0x18] sm:$0xff]
    %v110 = vld [vmem:[#allocation2 + $0x20] sm:$0xff]
    %v111 = vld [vmem:[#allocation2 + $0x28] sm:$0xff]
    %v112 = vld [vmem:[#allocation2 + $0x30] sm:$0xff]
    %v113 = vld [vmem:[#allocation2 + $0x38] sm:$0xff]
    %v114 = vld [vmem:[#allocation2 + $0x40] sm:$0xff]
    %v115 = vld [vmem:[#allocation2 + $0x48] sm:$0xff]
    %v116 = vld [vmem:[#allocation2 + $0x50] sm:$0xff]
    %v117 = vld [vmem:[#allocation2 + $0x58] sm:$0xff]
    %v118 = vld [vmem:[#allocation2 + $0x60] sm:$0xff]
    %v119 = vld [vmem:[#allocation2 + $0x68] sm:$0xff]
    %v120 = vld [vmem:[#allocation2 + $0x70] sm:$0xff]
    %v121 = vld [vmem:[#allocation2 + $0x78] sm:$0xff]
    %v122 = vld [vmem:[#allocation2 + $0x80] sm:$0xff]
    %v123 = vld [vmem:[#allocation2 + $0x88] sm:$0xff]
    %v124 = vld [vmem:[#allocation2 + $0x90] sm:$0xff]
    %v125 = vpack.c.bf16 %v106, %v106
    %v126 = vpack.c.bf16 %v107, %v107
    %v127 = vpack.c.bf16 %v108, %v108
    %v128 = vpack.c.bf16 %v109, %v109
    %v129 = vpack.c.bf16 %v110, %v110
    %v130 = vpack.c.bf16 %v111, %v111
    %v131 = vpack.c.bf16 %v112, %v112
    %v132 = vpack.c.bf16 %v113, %v113
    %v133 = vpack.c.bf16 %v114, %v114
    %v134 = vpack.c.bf16 %v115, %v115
    %v135 = vpack.c.bf16 %v116, %v116
    %v136 = vpack.c.bf16 %v117, %v117
    %v137 = vpack.c.bf16 %v118, %v118
    %v138 = vpack.c.bf16 %v119, %v119
    %v139 = vpack.c.bf16 %v120, %v120
    %v140 = vpack.c.bf16 %v121, %v121
    %v141 = vpack.c.bf16 %v122, %v122
    %v142 = vpack.c.bf16 %v123, %v123
    %v143 = vpack.c.bf16 %v124, %v124
    %v144 = vld [vmem:[#allocation5] sm:$0xf]
    %v145 = vld [vmem:[#allocation5 + $0x4] sm:$0xf]
    %v146 = vld [vmem:[#allocation5 + $0x8] sm:$0xf]
    %v147 = vld [vmem:[#allocation5 + $0xc] sm:$0xf]
    %v148 = vld [vmem:[#allocation5 + $0x10] sm:$0xf]
    %v149 = vld [vmem:[#allocation5 + $0x14] sm:$0xf]
    %v150 = vld [vmem:[#allocation5 + $0x18] sm:$0xf]
    %v151 = vld [vmem:[#allocation5 + $0x1c] sm:$0xf]
    %v152 = vld [vmem:[#allocation5 + $0x20] sm:$0xf]
    %v153 = vld [vmem:[#allocation5 + $0x24] sm:$0xf]
    %v154 = vld [vmem:[#allocation5 + $0x28] sm:$0xf]
    %v155 = vld [vmem:[#allocation5 + $0x2c] sm:$0xf]
    %v156 = vld [vmem:[#allocation5 + $0x30] sm:$0xf]
    %v157 = vld [vmem:[#allocation5 + $0x34] sm:$0xf]
    %v158 = vld [vmem:[#allocation5 + $0x38] sm:$0xf]
    %v159 = vld [vmem:[#allocation5 + $0x3c] sm:$0xf]
    %v160 = vld [vmem:[#allocation5 + $0x40] sm:$0xf]
    %v161 = vld [vmem:[#allocation5 + $0x44] sm:$0xf]
    %v162 = vld [vmem:[#allocation5 + $0x48] sm:$0xf]
    %v163 = vld [vmem:[#allocation5 + $0x4c] sm:$0xf]
    %v164 = vld [vmem:[#allocation5 + $0x50] sm:$0xf]
    %v165 = vld [vmem:[#allocation5 + $0x54] sm:$0xf]
    %v166 = vld [vmem:[#allocation5 + $0x58] sm:$0xf]
    %v167 = vld [vmem:[#allocation5 + $0x5c] sm:$0xf]
    %v168 = vld [vmem:[#allocation5 + $0x60] sm:$0xf]
    %v169 = vld [vmem:[#allocation5 + $0x64] sm:$0xf]
    %v170 = vld [vmem:[#allocation5 + $0x68] sm:$0xf]
    %v171 = vld [vmem:[#allocation5 + $0x6c] sm:$0xf]
    %v172 = vld [vmem:[#allocation5 + $0x70] sm:$0xf]
    %v173 = vld [vmem:[#allocation5 + $0x74] sm:$0xf]
    %v174 = vld [vmem:[#allocation5 + $0x78] sm:$0xf]
    %v175 = vld [vmem:[#allocation5 + $0x7c] sm:$0xf]
    %v176 = vld [vmem:[#allocation5 + $0x80] sm:$0xf]
    %v177 = vld [vmem:[#allocation5 + $0x84] sm:$0xf]
    %v178 = vld [vmem:[#allocation5 + $0x88] sm:$0xf]
    %v179 = vld [vmem:[#allocation5 + $0x8c] sm:$0xf]
    %v180 = vld [vmem:[#allocation5 + $0x90] sm:$0xf]
    %v181 = vld [vmem:[#allocation5 + $0x94] sm:$0xf]
    %v182 = vld [vmem:[#allocation5 + $0x98] sm:$0xf]
    %v183 = vld [vmem:[#allocation5 + $0x9c] sm:$0xf]
    %v184 = vld [vmem:[#allocation5 + $0xa0] sm:$0xf]
    %v185 = vld [vmem:[#allocation5 + $0xa4] sm:$0xf]
    %v186 = vld [vmem:[#allocation5 + $0xa8] sm:$0xf]
    %v187 = vld [vmem:[#allocation5 + $0xac] sm:$0xf]
    %v188 = vld [vmem:[#allocation5 + $0xb0] sm:$0xf]
    %v189 = vld [vmem:[#allocation5 + $0xb4] sm:$0xf]
    %v190 = vld [vmem:[#allocation5 + $0xb8] sm:$0xf]
    %v191 = vld [vmem:[#allocation5 + $0xbc] sm:$0xf]
    %v192 = vld [vmem:[#allocation5 + $0xc0] sm:$0xf]
    %v193 = vld [vmem:[#allocation5 + $0xc4] sm:$0xf]
    %v194 = vld [vmem:[#allocation5 + $0xc8] sm:$0xf]
    %v195 = vld [vmem:[#allocation5 + $0xcc] sm:$0xf]
    %v196 = vld [vmem:[#allocation5 + $0xd0] sm:$0xf]
    %v197 = vld [vmem:[#allocation5 + $0xd4] sm:$0xf]
    %v198 = vld [vmem:[#allocation5 + $0xd8] sm:$0xf]
    %v199 = vld [vmem:[#allocation5 + $0xdc] sm:$0xf]
    %v200 = vld [vmem:[#allocation5 + $0xe0] sm:$0xf]
    %v201 = vld [vmem:[#allocation5 + $0xe4] sm:$0xf]
    %v202 = vld [vmem:[#allocation5 + $0xe8] sm:$0xf]
    %v203 = vld [vmem:[#allocation5 + $0xec] sm:$0xf]
    %v204 = vld [vmem:[#allocation5 + $0xf0] sm:$0xf]
    %v205 = vld [vmem:[#allocation5 + $0xf4] sm:$0xf]
    %v206 = vld [vmem:[#allocation5 + $0xf8] sm:$0xf]
    %v207 = vld [vmem:[#allocation5 + $0xfc] sm:$0xf]
    %v208 = vld [vmem:[#allocation5 + $0x100] sm:$0xf]
    %v209 = vld [vmem:[#allocation5 + $0x104] sm:$0xf]
    %v210 = vld [vmem:[#allocation5 + $0x108] sm:$0xf]
    %v211 = vld [vmem:[#allocation5 + $0x10c] sm:$0xf]
    %v212 = vld [vmem:[#allocation5 + $0x110] sm:$0xf]
    %v213 = vld [vmem:[#allocation5 + $0x114] sm:$0xf]
    %v214 = vld [vmem:[#allocation5 + $0x118] sm:$0xf]
    %v215 = vld [vmem:[#allocation5 + $0x11c] sm:$0xf]
    %v216 = vld [vmem:[#allocation5 + $0x120] sm:$0xf]
    %v217 = vld [vmem:[#allocation5 + $0x124] sm:$0xf]
    %v218 = vld [vmem:[#allocation5 + $0x128] sm:$0xf]
    %v219 = vld [vmem:[#allocation5 + $0x12c] sm:$0xf]
    %v220 = vld [vmem:[#allocation5 + $0x130] sm:$0xf]
    %v221 = vld [vmem:[#allocation5 + $0x134] sm:$0xf]
    %v222 = vld [vmem:[#allocation5 + $0x138] sm:$0xf]
    %v223 = vld [vmem:[#allocation5 + $0x13c] sm:$0xf]
    %v224 = vld [vmem:[#allocation5 + $0x140] sm:$0xf]
    %v225 = vld [vmem:[#allocation5 + $0x144] sm:$0xf]
    %v226 = vld [vmem:[#allocation5 + $0x148] sm:$0xf]
    %v227 = vld [vmem:[#allocation5 + $0x14c] sm:$0xf]
    %v228 = vld [vmem:[#allocation5 + $0x150] sm:$0xf]
    %v229 = vld [vmem:[#allocation5 + $0x154] sm:$0xf]
    %v230 = vld [vmem:[#allocation5 + $0x158] sm:$0xf]
    %v231 = vld [vmem:[#allocation5 + $0x15c] sm:$0xf]
    %v232 = vld [vmem:[#allocation5 + $0x160] sm:$0xf]
    %v233 = vld [vmem:[#allocation5 + $0x164] sm:$0xf]
    %v234 = vld [vmem:[#allocation5 + $0x168] sm:$0xf]
    %v235 = vld [vmem:[#allocation5 + $0x16c] sm:$0xf]
    %v236 = vld [vmem:[#allocation5 + $0x170] sm:$0xf]
    %v237 = vld [vmem:[#allocation5 + $0x174] sm:$0xf]
    %v238 = vld [vmem:[#allocation5 + $0x178] sm:$0xf]
    %v239 = vld [vmem:[#allocation5 + $0x17c] sm:$0xf]
    %v240 = vld [vmem:[#allocation5 + $0x180] sm:$0xf]
    %v241 = vld [vmem:[#allocation5 + $0x184] sm:$0xf]
    %v242 = vld [vmem:[#allocation5 + $0x188] sm:$0xf]
    %v243 = vld [vmem:[#allocation5 + $0x18c] sm:$0xf]
    %v244 = vld [vmem:[#allocation5 + $0x190] sm:$0xf]
    %v245 = vld [vmem:[#allocation5 + $0x194] sm:$0xf]
    %v246 = vld [vmem:[#allocation5 + $0x198] sm:$0xf]
    %v247 = vld [vmem:[#allocation5 + $0x19c] sm:$0xf]
    %v248 = vld [vmem:[#allocation5 + $0x1a0] sm:$0xf]
    %v249 = vld [vmem:[#allocation5 + $0x1a4] sm:$0xf]
    %v250 = vld [vmem:[#allocation5 + $0x1a8] sm:$0xf]
    %v251 = vld [vmem:[#allocation5 + $0x1ac] sm:$0xf]
    %v252 = vld [vmem:[#allocation5 + $0x1b0] sm:$0xf]
    %v253 = vld [vmem:[#allocation5 + $0x1b4] sm:$0xf]
    %v254 = vld [vmem:[#allocation5 + $0x1b8] sm:$0xf]
    %v255 = vld [vmem:[#allocation5 + $0x1bc] sm:$0xf]
    %v256 = vld [vmem:[#allocation5 + $0x1c0] sm:$0xf]
    %v257 = vld [vmem:[#allocation5 + $0x1c4] sm:$0xf]
    %v258 = vld [vmem:[#allocation5 + $0x1c8] sm:$0xf]
    %v259 = vld [vmem:[#allocation5 + $0x1cc] sm:$0xf]
    %v260 = vld [vmem:[#allocation5 + $0x1d0] sm:$0xf]
    %v261 = vld [vmem:[#allocation5 + $0x1d4] sm:$0xf]
    %v262 = vld [vmem:[#allocation5 + $0x1d8] sm:$0xf]
    %v263 = vld [vmem:[#allocation5 + $0x1dc] sm:$0xf]
    %v264 = vld [vmem:[#allocation5 + $0x1e0] sm:$0xf]
    %v265 = vld [vmem:[#allocation5 + $0x1e4] sm:$0xf]
    %v266 = vld [vmem:[#allocation5 + $0x1e8] sm:$0xf]
    %v267 = vld [vmem:[#allocation5 + $0x1ec] sm:$0xf]
    %v268 = vld [vmem:[#allocation5 + $0x1f0] sm:$0xf]
    %v269 = vld [vmem:[#allocation5 + $0x1f4] sm:$0xf]
    %v270 = vld [vmem:[#allocation5 + $0x1f8] sm:$0xf]
    %v271 = vld [vmem:[#allocation5 + $0x1fc] sm:$0xf]
    %v272 = vld [vmem:[#allocation5 + $0x200] sm:$0xf]
    %v273 = vld [vmem:[#allocation5 + $0x204] sm:$0xf]
    %v274 = vld [vmem:[#allocation5 + $0x208] sm:$0xf]
    %v275 = vld [vmem:[#allocation5 + $0x20c] sm:$0xf]
    %v276 = vld [vmem:[#allocation5 + $0x210] sm:$0xf]
    %v277 = vld [vmem:[#allocation5 + $0x214] sm:$0xf]
    %v278 = vld [vmem:[#allocation5 + $0x218] sm:$0xf]
    %v279 = vld [vmem:[#allocation5 + $0x21c] sm:$0xf]
    %v280 = vld [vmem:[#allocation5 + $0x220] sm:$0xf]
    %v281 = vld [vmem:[#allocation5 + $0x224] sm:$0xf]
    %v282 = vld [vmem:[#allocation5 + $0x228] sm:$0xf]
    %v283 = vld [vmem:[#allocation5 + $0x22c] sm:$0xf]
    %v284 = vld [vmem:[#allocation5 + $0x230] sm:$0xf]
    %v285 = vld [vmem:[#allocation5 + $0x234] sm:$0xf]
    %v286 = vld [vmem:[#allocation5 + $0x238] sm:$0xf]
    %v287 = vld [vmem:[#allocation5 + $0x23c] sm:$0xf]
    %v288 = vld [vmem:[#allocation5 + $0x240] sm:$0xf]
    %v289 = vld [vmem:[#allocation5 + $0x244] sm:$0xf]
    %v290 = vld [vmem:[#allocation5 + $0x248] sm:$0xf]
    %v291 = vld [vmem:[#allocation5 + $0x24c] sm:$0xf]
    %v292 = vld [vmem:[#allocation5 + $0x250] sm:$0xf]
    %v293 = vld [vmem:[#allocation5 + $0x254] sm:$0xf]
    %v294 = vld [vmem:[#allocation5 + $0x258] sm:$0xf]
    %v295 = vld [vmem:[#allocation5 + $0x25c] sm:$0xf]
    %v296 = vld [vmem:[#allocation5 + $0x260] sm:$0xf]
    %v297 = vld [vmem:[#allocation5 + $0x264] sm:$0xf]
    %v298 = vld [vmem:[#allocation5 + $0x268] sm:$0xf]
    %v299 = vld [vmem:[#allocation5 + $0x26c] sm:$0xf]
    %v300 = vld [vmem:[#allocation5 + $0x270] sm:$0xf]
    %v301 = vld [vmem:[#allocation5 + $0x274] sm:$0xf]
    %v302 = vld [vmem:[#allocation5 + $0x278] sm:$0xf]
    %v303 = vld [vmem:[#allocation5 + $0x27c] sm:$0xf]
    %v304 = vld [vmem:[#allocation5 + $0x280] sm:$0xf]
    %v305 = vld [vmem:[#allocation5 + $0x284] sm:$0xf]
    %v306 = vld [vmem:[#allocation5 + $0x288] sm:$0xf]
    %v307 = vld [vmem:[#allocation5 + $0x28c] sm:$0xf]
    %v308 = vld [vmem:[#allocation5 + $0x290] sm:$0xf]
    %v309 = vld [vmem:[#allocation5 + $0x294] sm:$0xf]
    %v310 = vld [vmem:[#allocation5 + $0x298] sm:$0xf]
    %v311 = vld [vmem:[#allocation5 + $0x29c] sm:$0xf]
    %v312 = vld [vmem:[#allocation5 + $0x2a0] sm:$0xf]
    %v313 = vld [vmem:[#allocation5 + $0x2a4] sm:$0xf]
    %v314 = vld [vmem:[#allocation5 + $0x2a8] sm:$0xf]
    %v315 = vld [vmem:[#allocation5 + $0x2ac] sm:$0xf]
    %v316 = vld [vmem:[#allocation5 + $0x2b0] sm:$0xf]
    %v317 = vld [vmem:[#allocation5 + $0x2b4] sm:$0xf]
    %v318 = vld [vmem:[#allocation5 + $0x2b8] sm:$0xf]
    %v319 = vld [vmem:[#allocation5 + $0x2bc] sm:$0xf]
    %v320 = vld [vmem:[#allocation5 + $0x2c0] sm:$0xf]
    %v321 = vld [vmem:[#allocation5 + $0x2c4] sm:$0xf]
    %v322 = vld [vmem:[#allocation5 + $0x2c8] sm:$0xf]
    %v323 = vld [vmem:[#allocation5 + $0x2cc] sm:$0xf]
    %v324 = vld [vmem:[#allocation5 + $0x2d0] sm:$0xf]
    %v325 = vld [vmem:[#allocation5 + $0x2d4] sm:$0xf]
    %v326 = vld [vmem:[#allocation5 + $0x2d8] sm:$0xf]
    %v327 = vld [vmem:[#allocation5 + $0x2dc] sm:$0xf]
    %v328 = vld [vmem:[#allocation5 + $0x2e0] sm:$0xf]
    %v329 = vld [vmem:[#allocation5 + $0x2e4] sm:$0xf]
    %v330 = vld [vmem:[#allocation5 + $0x2e8] sm:$0xf]
    %v331 = vld [vmem:[#allocation5 + $0x2ec] sm:$0xf]
    %v332 = vld [vmem:[#allocation5 + $0x2f0] sm:$0xf]
    %v333 = vld [vmem:[#allocation5 + $0x2f4] sm:$0xf]
    %v334 = vld [vmem:[#allocation5 + $0x2f8] sm:$0xf]
    %v335 = vld [vmem:[#allocation5 + $0x2fc] sm:$0xf]
    %v336 = vld [vmem:[#allocation5 + $0x300] sm:$0xf]
    %v337 = vld [vmem:[#allocation5 + $0x304] sm:$0xf]
    %v338 = vld [vmem:[#allocation5 + $0x308] sm:$0xf]
    %v339 = vld [vmem:[#allocation5 + $0x30c] sm:$0xf]
    %v340 = vld [vmem:[#allocation5 + $0x310] sm:$0xf]
    %v341 = vld [vmem:[#allocation5 + $0x314] sm:$0xf]
    %v342 = vld [vmem:[#allocation5 + $0x318] sm:$0xf]
    %v343 = vld [vmem:[#allocation5 + $0x31c] sm:$0xf]
    %v344 = vld [vmem:[#allocation5 + $0x320] sm:$0xf]
    %v345 = vld [vmem:[#allocation5 + $0x324] sm:$0xf]
    %v346 = vld [vmem:[#allocation5 + $0x328] sm:$0xf]
    %v347 = vld [vmem:[#allocation5 + $0x32c] sm:$0xf]
    %v348 = vld [vmem:[#allocation5 + $0x330] sm:$0xf]
    %v349 = vld [vmem:[#allocation5 + $0x334] sm:$0xf]
    %v350 = vld [vmem:[#allocation5 + $0x338] sm:$0xf]
    %v351 = vld [vmem:[#allocation5 + $0x33c] sm:$0xf]
    %v352 = vld [vmem:[#allocation5 + $0x340] sm:$0xf]
    %v353 = vld [vmem:[#allocation5 + $0x344] sm:$0xf]
    %v354 = vld [vmem:[#allocation5 + $0x348] sm:$0xf]
    %v355 = vld [vmem:[#allocation5 + $0x34c] sm:$0xf]
    %v356 = vld [vmem:[#allocation5 + $0x350] sm:$0xf]
    %v357 = vld [vmem:[#allocation5 + $0x354] sm:$0xf]
    %v358 = vld [vmem:[#allocation5 + $0x358] sm:$0xf]
    %v359 = vld [vmem:[#allocation5 + $0x35c] sm:$0xf]
    %v360 = vld [vmem:[#allocation5 + $0x360] sm:$0xf]
    %v361 = vld [vmem:[#allocation5 + $0x364] sm:$0xf]
    %v362 = vld [vmem:[#allocation5 + $0x368] sm:$0xf]
    %v363 = vld [vmem:[#allocation5 + $0x36c] sm:$0xf]
    %v364 = vld [vmem:[#allocation5 + $0x370] sm:$0xf]
    %v365 = vld [vmem:[#allocation5 + $0x374] sm:$0xf]
    %v366 = vld [vmem:[#allocation5 + $0x378] sm:$0xf]
    %v367 = vld [vmem:[#allocation5 + $0x37c] sm:$0xf]
    %v368 = vld [vmem:[#allocation5 + $0x380] sm:$0xf]
    %v369 = vld [vmem:[#allocation5 + $0x384] sm:$0xf]
    %v370 = vld [vmem:[#allocation5 + $0x388] sm:$0xf]
    %v371 = vld [vmem:[#allocation5 + $0x38c] sm:$0xf]
    %v372 = vld [vmem:[#allocation5 + $0x390] sm:$0xf]
    %v373 = vld [vmem:[#allocation5 + $0x394] sm:$0xf]
    %v374 = vld [vmem:[#allocation5 + $0x398] sm:$0xf]
    %v375 = vld [vmem:[#allocation5 + $0x39c] sm:$0xf]
    %v376 = vld [vmem:[#allocation5 + $0x3a0] sm:$0xf]
    %v377 = vld [vmem:[#allocation5 + $0x3a4] sm:$0xf]
    %v378 = vld [vmem:[#allocation5 + $0x3a8] sm:$0xf]
    %v379 = vld [vmem:[#allocation5 + $0x3ac] sm:$0xf]
    %v380 = vld [vmem:[#allocation5 + $0x3b0] sm:$0xf]
    %v381 = vld [vmem:[#allocation5 + $0x3b4] sm:$0xf]
    %v382 = vld [vmem:[#allocation5 + $0x3b8] sm:$0xf]
    %v383 = vld [vmem:[#allocation5 + $0x3bc] sm:$0xf]
    %v384 = vld [vmem:[#allocation5 + $0x3c0] sm:$0xf]
    %v385 = vld [vmem:[#allocation5 + $0x3c4] sm:$0xf]
    %v386 = vld [vmem:[#allocation5 + $0x3c8] sm:$0xf]
    %v387 = vld [vmem:[#allocation5 + $0x3cc] sm:$0xf]
    %v388 = vld [vmem:[#allocation5 + $0x3d0] sm:$0xf]
    %v389 = vld [vmem:[#allocation5 + $0x3d4] sm:$0xf]
    %v390 = vld [vmem:[#allocation5 + $0x3d8] sm:$0xf]
    %v391 = vld [vmem:[#allocation5 + $0x3dc] sm:$0xf]
    %v392 = vld [vmem:[#allocation5 + $0x3e0] sm:$0xf]
    %v393 = vld [vmem:[#allocation5 + $0x3e4] sm:$0xf]
    %v394 = vld [vmem:[#allocation5 + $0x3e8] sm:$0xf]
    %v395 = vld [vmem:[#allocation5 + $0x3ec] sm:$0xf]
    %v396 = vld [vmem:[#allocation5 + $0x3f0] sm:$0xf]
    %v397 = vld [vmem:[#allocation5 + $0x3f4] sm:$0xf]
    %v398 = vld [vmem:[#allocation5 + $0x3f8] sm:$0xf]
    %v399 = vld [vmem:[#allocation5 + $0x3fc] sm:$0xf]
    %v400 = vld [vmem:[#allocation5 + $0x400] sm:$0xf]
    %v401 = vld [vmem:[#allocation5 + $0x404] sm:$0xf]
    %v402 = vld [vmem:[#allocation5 + $0x408] sm:$0xf]
    %v403 = vld [vmem:[#allocation5 + $0x40c] sm:$0xf]
    %v404 = vld [vmem:[#allocation5 + $0x410] sm:$0xf]
    %v405 = vld [vmem:[#allocation5 + $0x414] sm:$0xf]
    %v406 = vld [vmem:[#allocation5 + $0x418] sm:$0xf]
    %v407 = vld [vmem:[#allocation5 + $0x41c] sm:$0xf]
    %v408 = vld [vmem:[#allocation5 + $0x420] sm:$0xf]
    %v409 = vld [vmem:[#allocation5 + $0x424] sm:$0xf]
    %v410 = vld [vmem:[#allocation5 + $0x428] sm:$0xf]
    %v411 = vld [vmem:[#allocation5 + $0x42c] sm:$0xf]
    %v412 = vld [vmem:[#allocation5 + $0x430] sm:$0xf]
    %v413 = vld [vmem:[#allocation5 + $0x434] sm:$0xf]
    %v414 = vld [vmem:[#allocation5 + $0x438] sm:$0xf]
    %v415 = vld [vmem:[#allocation5 + $0x43c] sm:$0xf]
    %v416 = vld [vmem:[#allocation5 + $0x440] sm:$0xf]
    %v417 = vld [vmem:[#allocation5 + $0x444] sm:$0xf]
    %v418 = vld [vmem:[#allocation5 + $0x448] sm:$0xf]
    %v419 = vld [vmem:[#allocation5 + $0x44c] sm:$0xf]
    %v420 = vld [vmem:[#allocation5 + $0x450] sm:$0xf]
    %v421 = vld [vmem:[#allocation5 + $0x454] sm:$0xf]
    %v422 = vld [vmem:[#allocation5 + $0x458] sm:$0xf]
    %v423 = vld [vmem:[#allocation5 + $0x45c] sm:$0xf]
    %v424 = vld [vmem:[#allocation5 + $0x460] sm:$0xf]
    %v425 = vld [vmem:[#allocation5 + $0x464] sm:$0xf]
    %v426 = vld [vmem:[#allocation5 + $0x468] sm:$0xf]
    %v427 = vld [vmem:[#allocation5 + $0x46c] sm:$0xf]
    %v428 = vld [vmem:[#allocation5 + $0x470] sm:$0xf]
    %v429 = vld [vmem:[#allocation5 + $0x474] sm:$0xf]
    %v430 = vld [vmem:[#allocation5 + $0x478] sm:$0xf]
    %v431 = vld [vmem:[#allocation5 + $0x47c] sm:$0xf]
    %v432 = vld [vmem:[#allocation5 + $0x480] sm:$0xf]
    %v433 = vld [vmem:[#allocation5 + $0x484] sm:$0xf]
    %v434 = vld [vmem:[#allocation5 + $0x488] sm:$0xf]
    %v435 = vld [vmem:[#allocation5 + $0x48c] sm:$0xf]
    %v436 = vld [vmem:[#allocation5 + $0x490] sm:$0xf]
    %v437 = vld [vmem:[#allocation5 + $0x494] sm:$0xf]
    %v438 = vld [vmem:[%s2] sm:$0x1]
    %v440 = vlaneseq
    %v441 = vshrl.u32 %v440, 7
    %v442 = vsub.s32 0, %v441
    %v443 = vrot.slane %v438, %v442
    %v739 = vunpack.c.l.b16 %v144
    %v740 = vunpack.c.l.b16 %v145
    %v741 = vunpack.c.l.b16 %v146
    %v742 = vunpack.c.l.b16 %v147
    %v743 = vunpack.c.l.b16 %v148
    %v744 = vunpack.c.l.b16 %v149
    %v745 = vunpack.c.l.b16 %v150
    %v746 = vunpack.c.l.b16 %v151
    %v747 = vunpack.c.l.b16 %v152
    %v748 = vunpack.c.l.b16 %v153
    %v749 = vunpack.c.l.b16 %v154
    %v750 = vunpack.c.l.b16 %v155
    %v751 = vunpack.c.l.b16 %v156
    %v752 = vunpack.c.l.b16 %v157
    %v753 = vunpack.c.l.b16 %v158
    %v754 = vunpack.c.l.b16 %v159
    %v755 = vunpack.c.l.b16 %v160
    %v756 = vunpack.c.l.b16 %v161
    %v757 = vunpack.c.l.b16 %v162
    %v758 = vunpack.c.l.b16 %v163
    %v759 = vunpack.c.l.b16 %v164
    %v760 = vunpack.c.l.b16 %v165
    %v761 = vunpack.c.l.b16 %v166
    %v762 = vunpack.c.l.b16 %v167
    %v763 = vunpack.c.l.b16 %v168
    %v764 = vunpack.c.l.b16 %v169
    %v765 = vunpack.c.l.b16 %v170
    %v766 = vunpack.c.l.b16 %v171
    %v767 = vunpack.c.l.b16 %v172
    %v768 = vunpack.c.l.b16 %v173
    %v769 = vunpack.c.l.b16 %v174
    %v770 = vunpack.c.l.b16 %v175
    %v771 = vunpack.c.l.b16 %v176
    %v772 = vunpack.c.l.b16 %v177
    %v773 = vunpack.c.l.b16 %v178
    %v774 = vunpack.c.l.b16 %v179
    %v775 = vunpack.c.l.b16 %v180
    %v776 = vunpack.c.l.b16 %v181
    %v777 = vunpack.c.l.b16 %v182
    %v778 = vunpack.c.l.b16 %v183
    %v779 = vunpack.c.l.b16 %v184
    %v780 = vunpack.c.l.b16 %v185
    %v781 = vunpack.c.l.b16 %v186
    %v782 = vunpack.c.l.b16 %v187
    %v783 = vunpack.c.l.b16 %v188
    %v784 = vunpack.c.l.b16 %v189
    %v785 = vunpack.c.l.b16 %v190
    %v786 = vunpack.c.l.b16 %v191
    %v787 = vunpack.c.l.b16 %v192
    %v788 = vunpack.c.l.b16 %v193
    %v789 = vunpack.c.l.b16 %v194
    %v790 = vunpack.c.l.b16 %v195
    %v791 = vunpack.c.l.b16 %v196
    %v792 = vunpack.c.l.b16 %v197
    %v793 = vunpack.c.l.b16 %v198
    %v794 = vunpack.c.l.b16 %v199
    %v795 = vunpack.c.l.b16 %v200
    %v796 = vunpack.c.l.b16 %v201
    %v797 = vunpack.c.l.b16 %v202
    %v798 = vunpack.c.l.b16 %v203
    %v799 = vunpack.c.l.b16 %v204
    %v800 = vunpack.c.l.b16 %v205
    %v801 = vunpack.c.l.b16 %v206
    %v802 = vunpack.c.l.b16 %v207
    %v803 = vunpack.c.l.b16 %v208
    %v804 = vunpack.c.l.b16 %v209
    %v805 = vunpack.c.l.b16 %v210
    %v806 = vunpack.c.l.b16 %v211
    %v807 = vunpack.c.l.b16 %v212
    %v808 = vunpack.c.l.b16 %v213
    %v809 = vunpack.c.l.b16 %v214
    %v810 = vunpack.c.l.b16 %v215
    %v811 = vunpack.c.l.b16 %v216
    %v812 = vunpack.c.l.b16 %v217
    %v813 = vunpack.c.l.b16 %v218
    %v814 = vunpack.c.l.b16 %v219
    %v815 = vunpack.c.l.b16 %v220
    %v816 = vunpack.c.l.b16 %v221
    %v817 = vunpack.c.l.b16 %v222
    %v818 = vunpack.c.l.b16 %v223
    %v819 = vunpack.c.l.b16 %v224
    %v820 = vunpack.c.l.b16 %v225
    %v821 = vunpack.c.l.b16 %v226
    %v822 = vunpack.c.l.b16 %v227
    %v823 = vunpack.c.l.b16 %v228
    %v824 = vunpack.c.l.b16 %v229
    %v825 = vunpack.c.l.b16 %v230
    %v826 = vunpack.c.l.b16 %v231
    %v827 = vunpack.c.l.b16 %v232
    %v828 = vunpack.c.l.b16 %v233
    %v829 = vunpack.c.l.b16 %v234
    %v830 = vunpack.c.l.b16 %v235
    %v831 = vunpack.c.l.b16 %v236
    %v832 = vunpack.c.l.b16 %v237
    %v833 = vunpack.c.l.b16 %v238
    %v834 = vunpack.c.l.b16 %v239
    %v835 = vunpack.c.l.b16 %v240
    %v836 = vunpack.c.l.b16 %v241
    %v837 = vunpack.c.l.b16 %v242
    %v838 = vunpack.c.l.b16 %v243
    %v839 = vunpack.c.l.b16 %v244
    %v840 = vunpack.c.l.b16 %v245
    %v841 = vunpack.c.l.b16 %v246
    %v842 = vunpack.c.l.b16 %v247
    %v843 = vunpack.c.l.b16 %v248
    %v844 = vunpack.c.l.b16 %v249
    %v845 = vunpack.c.l.b16 %v250
    %v846 = vunpack.c.l.b16 %v251
    %v847 = vunpack.c.l.b16 %v252
    %v848 = vunpack.c.l.b16 %v253
    %v849 = vunpack.c.l.b16 %v254
    %v850 = vunpack.c.l.b16 %v255
    %v851 = vunpack.c.l.b16 %v256
    %v852 = vunpack.c.l.b16 %v257
    %v853 = vunpack.c.l.b16 %v258
    %v854 = vunpack.c.l.b16 %v259
    %v855 = vunpack.c.l.b16 %v260
    %v856 = vunpack.c.l.b16 %v261
    %v857 = vunpack.c.l.b16 %v262
    %v858 = vunpack.c.l.b16 %v263
    %v859 = vunpack.c.l.b16 %v264
    %v860 = vunpack.c.l.b16 %v265
    %v861 = vunpack.c.l.b16 %v266
    %v862 = vunpack.c.l.b16 %v267
    %v863 = vunpack.c.l.b16 %v268
    %v864 = vunpack.c.l.b16 %v269
    %v865 = vunpack.c.l.b16 %v270
    %v866 = vunpack.c.l.b16 %v271
    %v867 = vunpack.c.l.b16 %v272
    %v868 = vunpack.c.l.b16 %v273
    %v869 = vunpack.c.l.b16 %v274
    %v870 = vunpack.c.l.b16 %v275
    %v871 = vunpack.c.l.b16 %v276
    %v872 = vunpack.c.l.b16 %v277
    %v873 = vunpack.c.l.b16 %v278
    %v874 = vunpack.c.l.b16 %v279
    %v875 = vunpack.c.l.b16 %v280
    %v876 = vunpack.c.l.b16 %v281
    %v877 = vunpack.c.l.b16 %v282
    %v878 = vunpack.c.l.b16 %v283
    %v879 = vunpack.c.l.b16 %v284
    %v880 = vunpack.c.l.b16 %v285
    %v881 = vunpack.c.l.b16 %v286
    %v882 = vunpack.c.l.b16 %v287
    %v883 = vunpack.c.l.b16 %v288
    %v884 = vunpack.c.l.b16 %v289
    %v885 = vunpack.c.l.b16 %v290
    %v886 = vunpack.c.l.b16 %v291
    %v887 = vunpack.c.l.b16 %v292
    %v888 = vunpack.c.l.b16 %v293
    %v889 = vunpack.c.l.b16 %v294
    %v890 = vunpack.c.l.b16 %v295
    %v891 = vunpack.c.l.b16 %v296
    %v892 = vunpack.c.l.b16 %v297
    %v893 = vunpack.c.l.b16 %v298
    %v894 = vunpack.c.l.b16 %v299
    %v895 = vunpack.c.l.b16 %v300
    %v896 = vunpack.c.l.b16 %v301
    %v897 = vunpack.c.l.b16 %v302
    %v898 = vunpack.c.l.b16 %v303
    %v899 = vunpack.c.l.b16 %v304
    %v900 = vunpack.c.l.b16 %v305
    %v901 = vunpack.c.l.b16 %v306
    %v902 = vunpack.c.l.b16 %v307
    %v903 = vunpack.c.l.b16 %v308
    %v904 = vunpack.c.l.b16 %v309
    %v905 = vunpack.c.l.b16 %v310
    %v906 = vunpack.c.l.b16 %v311
    %v907 = vunpack.c.l.b16 %v312
    %v908 = vunpack.c.l.b16 %v313
    %v909 = vunpack.c.l.b16 %v314
    %v910 = vunpack.c.l.b16 %v315
    %v911 = vunpack.c.l.b16 %v316
    %v912 = vunpack.c.l.b16 %v317
    %v913 = vunpack.c.l.b16 %v318
    %v914 = vunpack.c.l.b16 %v319
    %v915 = vunpack.c.l.b16 %v320
    %v916 = vunpack.c.l.b16 %v321
    %v917 = vunpack.c.l.b16 %v322
    %v918 = vunpack.c.l.b16 %v323
    %v919 = vunpack.c.l.b16 %v324
    %v920 = vunpack.c.l.b16 %v325
    %v921 = vunpack.c.l.b16 %v326
    %v922 = vunpack.c.l.b16 %v327
    %v923 = vunpack.c.l.b16 %v328
    %v924 = vunpack.c.l.b16 %v329
    %v925 = vunpack.c.l.b16 %v330
    %v926 = vunpack.c.l.b16 %v331
    %v927 = vunpack.c.l.b16 %v332
    %v928 = vunpack.c.l.b16 %v333
    %v929 = vunpack.c.l.b16 %v334
    %v930 = vunpack.c.l.b16 %v335
    %v931 = vunpack.c.l.b16 %v336
    %v932 = vunpack.c.l.b16 %v337
    %v933 = vunpack.c.l.b16 %v338
    %v934 = vunpack.c.l.b16 %v339
    %v935 = vunpack.c.l.b16 %v340
    %v936 = vunpack.c.l.b16 %v341
    %v937 = vunpack.c.l.b16 %v342
    %v938 = vunpack.c.l.b16 %v343
    %v939 = vunpack.c.l.b16 %v344
    %v940 = vunpack.c.l.b16 %v345
    %v941 = vunpack.c.l.b16 %v346
    %v942 = vunpack.c.l.b16 %v347
    %v943 = vunpack.c.l.b16 %v348
    %v944 = vunpack.c.l.b16 %v349
    %v945 = vunpack.c.l.b16 %v350
    %v946 = vunpack.c.l.b16 %v351
    %v947 = vunpack.c.l.b16 %v352
    %v948 = vunpack.c.l.b16 %v353
    %v949 = vunpack.c.l.b16 %v354
    %v950 = vunpack.c.l.b16 %v355
    %v951 = vunpack.c.l.b16 %v356
    %v952 = vunpack.c.l.b16 %v357
    %v953 = vunpack.c.l.b16 %v358
    %v954 = vunpack.c.l.b16 %v359
    %v955 = vunpack.c.l.b16 %v360
    %v956 = vunpack.c.l.b16 %v361
    %v957 = vunpack.c.l.b16 %v362
    %v958 = vunpack.c.l.b16 %v363
    %v959 = vunpack.c.l.b16 %v364
    %v960 = vunpack.c.l.b16 %v365
    %v961 = vunpack.c.l.b16 %v366
    %v962 = vunpack.c.l.b16 %v367
    %v963 = vunpack.c.l.b16 %v368
    %v964 = vunpack.c.l.b16 %v369
    %v965 = vunpack.c.l.b16 %v370
    %v966 = vunpack.c.l.b16 %v371
    %v967 = vunpack.c.l.b16 %v372
    %v968 = vunpack.c.l.b16 %v373
    %v969 = vunpack.c.l.b16 %v374
    %v970 = vunpack.c.l.b16 %v375
    %v971 = vunpack.c.l.b16 %v376
    %v972 = vunpack.c.l.b16 %v377
    %v973 = vunpack.c.l.b16 %v378
    %v974 = vunpack.c.l.b16 %v379
    %v975 = vunpack.c.l.b16 %v380
    %v976 = vunpack.c.l.b16 %v381
    %v977 = vunpack.c.l.b16 %v382
    %v978 = vunpack.c.l.b16 %v383
    %v979 = vunpack.c.l.b16 %v384
    %v980 = vunpack.c.l.b16 %v385
    %v981 = vunpack.c.l.b16 %v386
    %v982 = vunpack.c.l.b16 %v387
    %v983 = vunpack.c.l.b16 %v388
    %v984 = vunpack.c.l.b16 %v389
    %v985 = vunpack.c.l.b16 %v390
    %v986 = vunpack.c.l.b16 %v391
    %v987 = vunpack.c.l.b16 %v392
    %v988 = vunpack.c.l.b16 %v393
    %v989 = vunpack.c.l.b16 %v394
    %v990 = vunpack.c.l.b16 %v395
    %v991 = vunpack.c.l.b16 %v396
    %v992 = vunpack.c.l.b16 %v397
    %v993 = vunpack.c.l.b16 %v398
    %v994 = vunpack.c.l.b16 %v399
    %v995 = vunpack.c.l.b16 %v400
    %v996 = vunpack.c.l.b16 %v401
    %v997 = vunpack.c.l.b16 %v402
    %v998 = vunpack.c.l.b16 %v403
    %v999 = vunpack.c.l.b16 %v404
    %v1000 = vunpack.c.l.b16 %v405
    %v1001 = vunpack.c.l.b16 %v406
    %v1002 = vunpack.c.l.b16 %v407
    %v1003 = vunpack.c.l.b16 %v408
    %v1004 = vunpack.c.l.b16 %v409
    %v1005 = vunpack.c.l.b16 %v410
    %v1006 = vunpack.c.l.b16 %v411
    %v1007 = vunpack.c.l.b16 %v412
    %v1008 = vunpack.c.l.b16 %v413
    %v1009 = vunpack.c.l.b16 %v414
    %v1010 = vunpack.c.l.b16 %v415
    %v1011 = vunpack.c.l.b16 %v416
    %v1012 = vunpack.c.l.b16 %v417
    %v1013 = vunpack.c.l.b16 %v418
    %v1014 = vunpack.c.l.b16 %v419
    %v1015 = vunpack.c.l.b16 %v420
    %v1016 = vunpack.c.l.b16 %v421
    %v1017 = vunpack.c.l.b16 %v422
    %v1018 = vunpack.c.l.b16 %v423
    %v1019 = vunpack.c.l.b16 %v424
    %v1020 = vunpack.c.l.b16 %v425
    %v1021 = vunpack.c.l.b16 %v426
    %v1022 = vunpack.c.l.b16 %v427
    %v1023 = vunpack.c.l.b16 %v428
    %v1024 = vunpack.c.l.b16 %v429
    %v1025 = vunpack.c.l.b16 %v430
    %v1026 = vunpack.c.l.b16 %v431
    %v1027 = vunpack.c.l.b16 %v432
    %v1028 = vunpack.c.l.b16 %v433
    %v1029 = vunpack.c.l.b16 %v434
    %v1030 = vunpack.c.l.b16 %v435
    %v1031 = vunpack.c.l.b16 %v436
    %v1032 = vunpack.c.l.b16 %v437
    %v1033 = vpack.c.b16 %v740, %v739
    %v1034 = vpack.c.b16 %v742, %v741
    %v1035 = vpack.c.b16 %v744, %v743
    %v1036 = vpack.c.b16 %v746, %v745
    %v1037 = vpack.c.b16 %v748, %v747
    %v1038 = vpack.c.b16 %v750, %v749
    %v1039 = vpack.c.b16 %v752, %v751
    %v1040 = vpack.c.b16 %v754, %v753
    %v1041 = vpack.c.b16 %v756, %v755
    %v1042 = vpack.c.b16 %v758, %v757
    %v1043 = vpack.c.b16 %v760, %v759
    %v1044 = vpack.c.b16 %v762, %v761
    %v1045 = vpack.c.b16 %v764, %v763
    %v1046 = vpack.c.b16 %v766, %v765
    %v1047 = vpack.c.b16 %v768, %v767
    %v1048 = vpack.c.b16 %v770, %v769
    %v1049 = vpack.c.b16 %v772, %v771
    %v1050 = vpack.c.b16 %v774, %v773
    %v1051 = vpack.c.b16 %v776, %v775
    %v1052 = vpack.c.b16 %v778, %v777
    %v1053 = vpack.c.b16 %v780, %v779
    %v1054 = vpack.c.b16 %v782, %v781
    %v1055 = vpack.c.b16 %v784, %v783
    %v1056 = vpack.c.b16 %v786, %v785
    %v1057 = vpack.c.b16 %v788, %v787
    %v1058 = vpack.c.b16 %v790, %v789
    %v1059 = vpack.c.b16 %v792, %v791
    %v1060 = vpack.c.b16 %v794, %v793
    %v1061 = vpack.c.b16 %v796, %v795
    %v1062 = vpack.c.b16 %v798, %v797
    %v1063 = vpack.c.b16 %v800, %v799
    %v1064 = vpack.c.b16 %v802, %v801
    %v1065 = vpack.c.b16 %v804, %v803
    %v1066 = vpack.c.b16 %v806, %v805
    %v1067 = vpack.c.b16 %v808, %v807
    %v1068 = vpack.c.b16 %v810, %v809
    %v1069 = vpack.c.b16 %v812, %v811
    %v1070 = vpack.c.b16 %v814, %v813
    %v1071 = vpack.c.b16 %v816, %v815
    %v1072 = vpack.c.b16 %v818, %v817
    %v1073 = vpack.c.b16 %v820, %v819
    %v1074 = vpack.c.b16 %v822, %v821
    %v1075 = vpack.c.b16 %v824, %v823
    %v1076 = vpack.c.b16 %v826, %v825
    %v1077 = vpack.c.b16 %v828, %v827
    %v1078 = vpack.c.b16 %v830, %v829
    %v1079 = vpack.c.b16 %v832, %v831
    %v1080 = vpack.c.b16 %v834, %v833
    %v1081 = vpack.c.b16 %v836, %v835
    %v1082 = vpack.c.b16 %v838, %v837
    %v1083 = vpack.c.b16 %v840, %v839
    %v1084 = vpack.c.b16 %v842, %v841
    %v1085 = vpack.c.b16 %v844, %v843
    %v1086 = vpack.c.b16 %v846, %v845
    %v1087 = vpack.c.b16 %v848, %v847
    %v1088 = vpack.c.b16 %v850, %v849
    %v1089 = vpack.c.b16 %v852, %v851
    %v1090 = vpack.c.b16 %v854, %v853
    %v1091 = vpack.c.b16 %v856, %v855
    %v1092 = vpack.c.b16 %v858, %v857
    %v1093 = vpack.c.b16 %v860, %v859
    %v1094 = vpack.c.b16 %v862, %v861
    %v1095 = vpack.c.b16 %v864, %v863
    %v1096 = vpack.c.b16 %v866, %v865
    %v1097 = vpack.c.b16 %v868, %v867
    %v1098 = vpack.c.b16 %v870, %v869
    %v1099 = vpack.c.b16 %v872, %v871
    %v1100 = vpack.c.b16 %v874, %v873
    %v1101 = vpack.c.b16 %v876, %v875
    %v1102 = vpack.c.b16 %v878, %v877
    %v1103 = vpack.c.b16 %v880, %v879
    %v1104 = vpack.c.b16 %v882, %v881
    %v1105 = vpack.c.b16 %v884, %v883
    %v1106 = vpack.c.b16 %v886, %v885
    %v1107 = vpack.c.b16 %v888, %v887
    %v1108 = vpack.c.b16 %v890, %v889
    %v1109 = vpack.c.b16 %v892, %v891
    %v1110 = vpack.c.b16 %v894, %v893
    %v1111 = vpack.c.b16 %v896, %v895
    %v1112 = vpack.c.b16 %v898, %v897
    %v1113 = vpack.c.b16 %v900, %v899
    %v1114 = vpack.c.b16 %v902, %v901
    %v1115 = vpack.c.b16 %v904, %v903
    %v1116 = vpack.c.b16 %v906, %v905
    %v1117 = vpack.c.b16 %v908, %v907
    %v1118 = vpack.c.b16 %v910, %v909
    %v1119 = vpack.c.b16 %v912, %v911
    %v1120 = vpack.c.b16 %v914, %v913
    %v1121 = vpack.c.b16 %v916, %v915
    %v1122 = vpack.c.b16 %v918, %v917
    %v1123 = vpack.c.b16 %v920, %v919
    %v1124 = vpack.c.b16 %v922, %v921
    %v1125 = vpack.c.b16 %v924, %v923
    %v1126 = vpack.c.b16 %v926, %v925
    %v1127 = vpack.c.b16 %v928, %v927
    %v1128 = vpack.c.b16 %v930, %v929
    %v1129 = vpack.c.b16 %v932, %v931
    %v1130 = vpack.c.b16 %v934, %v933
    %v1131 = vpack.c.b16 %v936, %v935
    %v1132 = vpack.c.b16 %v938, %v937
    %v1133 = vpack.c.b16 %v940, %v939
    %v1134 = vpack.c.b16 %v942, %v941
    %v1135 = vpack.c.b16 %v944, %v943
    %v1136 = vpack.c.b16 %v946, %v945
    %v1137 = vpack.c.b16 %v948, %v947
    %v1138 = vpack.c.b16 %v950, %v949
    %v1139 = vpack.c.b16 %v952, %v951
    %v1140 = vpack.c.b16 %v954, %v953
    %v1141 = vpack.c.b16 %v956, %v955
    %v1142 = vpack.c.b16 %v958, %v957
    %v1143 = vpack.c.b16 %v960, %v959
    %v1144 = vpack.c.b16 %v962, %v961
    %v1145 = vpack.c.b16 %v964, %v963
    %v1146 = vpack.c.b16 %v966, %v965
    %v1147 = vpack.c.b16 %v968, %v967
    %v1148 = vpack.c.b16 %v970, %v969
    %v1149 = vpack.c.b16 %v972, %v971
    %v1150 = vpack.c.b16 %v974, %v973
    %v1151 = vpack.c.b16 %v976, %v975
    %v1152 = vpack.c.b16 %v978, %v977
    %v1153 = vpack.c.b16 %v980, %v979
    %v1154 = vpack.c.b16 %v982, %v981
    %v1155 = vpack.c.b16 %v984, %v983
    %v1156 = vpack.c.b16 %v986, %v985
    %v1157 = vpack.c.b16 %v988, %v987
    %v1158 = vpack.c.b16 %v990, %v989
    %v1159 = vpack.c.b16 %v992, %v991
    %v1160 = vpack.c.b16 %v994, %v993
    %v1161 = vpack.c.b16 %v996, %v995
    %v1162 = vpack.c.b16 %v998, %v997
    %v1163 = vpack.c.b16 %v1000, %v999
    %v1164 = vpack.c.b16 %v1002, %v1001
    %v1165 = vpack.c.b16 %v1004, %v1003
    %v1166 = vpack.c.b16 %v1006, %v1005
    %v1167 = vpack.c.b16 %v1008, %v1007
    %v1168 = vpack.c.b16 %v1010, %v1009
    %v1169 = vpack.c.b16 %v1012, %v1011
    %v1170 = vpack.c.b16 %v1014, %v1013
    %v1171 = vpack.c.b16 %v1016, %v1015
    %v1172 = vpack.c.b16 %v1018, %v1017
    %v1173 = vpack.c.b16 %v1020, %v1019
    %v1174 = vpack.c.b16 %v1022, %v1021
    %v1175 = vpack.c.b16 %v1024, %v1023
    %v1176 = vpack.c.b16 %v1026, %v1025
    %v1177 = vpack.c.b16 %v1028, %v1027
    %v1178 = vpack.c.b16 %v1030, %v1029
    %v1179 = vpack.c.b16 %v1032, %v1031
    %vm1327 = vcmask 392192
    %v1329 = vsel %vm1327, %v143, 0
    %1331 = vmatprep.subr.bf16.mxu0 0
    %1332 = vmatpush1.bf16.msra.mxu0 %v1033
    %1333 = vmatprep.subr.bf16.mxu0 0
    %1334 = vmatpush1.bf16.msra.mxu0 %v1034
    %1335 = vmatprep.subr.bf16.mxu0 0
    %1336 = vmatpush1.bf16.msra.mxu0 %v1035
    %1337 = vmatprep.subr.bf16.mxu0 0
    %1338 = vmatpush1.bf16.msra.mxu0 %v1036
    %1339 = vmatprep.subr.bf16.mxu0 0
    %1340 = vmatpush1.bf16.msra.mxu0 %v1037
    %1341 = vmatprep.subr.bf16.mxu0 0
    %1342 = vmatpush1.bf16.msra.mxu0 %v1038
    %1343 = vmatprep.subr.bf16.mxu0 0
    %1344 = vmatpush1.bf16.msra.mxu0 %v1039
    %1345 = vmatprep.subr.bf16.mxu0 0
    %1346 = vmatpush1.bf16.msra.mxu0 %v1040
    %1347 = vmatprep.subr.bf16.mxu0 0
    %1348 = vmatpush1.bf16.msra.mxu0 %v1041
    %1349 = vmatprep.subr.bf16.mxu0 0
    %1350 = vmatpush1.bf16.msra.mxu0 %v1042
    %1351 = vmatprep.subr.bf16.mxu0 0
    %1352 = vmatpush1.bf16.msra.mxu0 %v1043
    %1353 = vmatprep.subr.bf16.mxu0 0
    %1354 = vmatpush1.bf16.msra.mxu0 %v1044
    %1355 = vmatprep.subr.bf16.mxu0 0
    %1356 = vmatpush1.bf16.msra.mxu0 %v1045
    %1357 = vmatprep.subr.bf16.mxu0 0
    %1358 = vmatpush1.bf16.msra.mxu0 %v1046
    %1359 = vmatprep.subr.bf16.mxu0 0
    %1360 = vmatpush1.bf16.msra.mxu0 %v1047
    %1361 = vmatprep.subr.bf16.mxu0 0
    %1362 = vmatpush1.bf16.msra.mxu0 %v1048
    %1363 = vmatprep.mubr.bf16.mxu0 %v126
    %1364 = vmatmul.mubr.bf16.gmra.mrb[0].mxu0 %v125
    %v1365 = vpop.f32.mrb[0].mxu0
    %v1366 = vadd.f32 %v443, %v1365
    %v1367 = vpop.f32.mrb[0].mxu0
    %v1368 = vpop.f32.mrb[0].mxu0
    %v1369 = vpop.f32.mrb[0].mxu0
    %1370 = vdwg.mxu0
    %1371 = vmatprep.subr.bf16.mxu0 0
    %1372 = vmatpush1.bf16.msra.mxu0 %v1049
    %1373 = vmatprep.subr.bf16.mxu0 0
    %1374 = vmatpush1.bf16.msra.mxu0 %v1050
    %1375 = vmatprep.subr.bf16.mxu0 0
    %1376 = vmatpush1.bf16.msra.mxu0 %v1051
    %1377 = vmatprep.subr.bf16.mxu0 0
    %1378 = vmatpush1.bf16.msra.mxu0 %v1052
    %1379 = vmatprep.subr.bf16.mxu0 0
    %1380 = vmatpush1.bf16.msra.mxu0 %v1053
    %1381 = vmatprep.subr.bf16.mxu0 0
    %1382 = vmatpush1.bf16.msra.mxu0 %v1054
    %1383 = vmatprep.subr.bf16.mxu0 0
    %1384 = vmatpush1.bf16.msra.mxu0 %v1055
    %1385 = vmatprep.subr.bf16.mxu0 0
    %1386 = vmatpush1.bf16.msra.mxu0 %v1056
    %1387 = vmatprep.subr.bf16.mxu0 0
    %1388 = vmatpush1.bf16.msra.mxu0 %v1057
    %1389 = vmatprep.subr.bf16.mxu0 0
    %1390 = vmatpush1.bf16.msra.mxu0 %v1058
    %1391 = vmatprep.subr.bf16.mxu0 0
    %1392 = vmatpush1.bf16.msra.mxu0 %v1059
    %1393 = vmatprep.subr.bf16.mxu0 0
    %1394 = vmatpush1.bf16.msra.mxu0 %v1060
    %1395 = vmatprep.subr.bf16.mxu0 0
    %1396 = vmatpush1.bf16.msra.mxu0 %v1061
    %1397 = vmatprep.subr.bf16.mxu0 0
    %1398 = vmatpush1.bf16.msra.mxu0 %v1062
    %1399 = vmatprep.subr.bf16.mxu0 0
    %1400 = vmatpush1.bf16.msra.mxu0 %v1063
    %1401 = vmatprep.subr.bf16.mxu0 0
    %1402 = vmatpush1.bf16.msra.mxu0 %v1064
    %1403 = vmatprep.mubr.bf16.mxu0 %v128
    %1404 = vmatmul.mubr.bf16.gmra.mrb[0].mxu0 %v127
    %v1405 = vpop.f32.mrb[0].mxu0
    %v1406 = vadd.f32 %v1366, %v1405
    %v1407 = vpop.f32.mrb[0].mxu0
    %v1408 = vpop.f32.mrb[0].mxu0
    %v1409 = vpop.f32.mrb[0].mxu0
    %1410 = vdwg.mxu0
    %1411 = vmatprep.subr.bf16.mxu0 0
    %1412 = vmatpush1.bf16.msra.mxu0 %v1065
    %1413 = vmatprep.subr.bf16.mxu0 0
    %1414 = vmatpush1.bf16.msra.mxu0 %v1066
    %1415 = vmatprep.subr.bf16.mxu0 0
    %1416 = vmatpush1.bf16.msra.mxu0 %v1067
    %1417 = vmatprep.subr.bf16.mxu0 0
    %1418 = vmatpush1.bf16.msra.mxu0 %v1068
    %1419 = vmatprep.subr.bf16.mxu0 0
    %1420 = vmatpush1.bf16.msra.mxu0 %v1069
    %1421 = vmatprep.subr.bf16.mxu0 0
    %1422 = vmatpush1.bf16.msra.mxu0 %v1070
    %1423 = vmatprep.subr.bf16.mxu0 0
    %1424 = vmatpush1.bf16.msra.mxu0 %v1071
    %1425 = vmatprep.subr.bf16.mxu0 0
    %1426 = vmatpush1.bf16.msra.mxu0 %v1072
    %1427 = vmatprep.subr.bf16.mxu0 0
    %1428 = vmatpush1.bf16.msra.mxu0 %v1073
    %1429 = vmatprep.subr.bf16.mxu0 0
    %1430 = vmatpush1.bf16.msra.mxu0 %v1074
    %1431 = vmatprep.subr.bf16.mxu0 0
    %1432 = vmatpush1.bf16.msra.mxu0 %v1075
    %1433 = vmatprep.subr.bf16.mxu0 0
    %1434 = vmatpush1.bf16.msra.mxu0 %v1076
    %1435 = vmatprep.subr.bf16.mxu0 0
    %1436 = vmatpush1.bf16.msra.mxu0 %v1077
    %1437 = vmatprep.subr.bf16.mxu0 0
    %1438 = vmatpush1.bf16.msra.mxu0 %v1078
    %1439 = vmatprep.subr.bf16.mxu0 0
    %1440 = vmatpush1.bf16.msra.mxu0 %v1079
    %1441 = vmatprep.subr.bf16.mxu0 0
    %1442 = vmatpush1.bf16.msra.mxu0 %v1080
    %1443 = vmatprep.mubr.bf16.mxu0 %v130
    %1444 = vmatmul.mubr.bf16.gmra.mrb[0].mxu0 %v129
    %v1445 = vpop.f32.mrb[0].mxu0
    %v1446 = vadd.f32 %v1406, %v1445
    %v1447 = vpop.f32.mrb[0].mxu0
    %v1448 = vpop.f32.mrb[0].mxu0
    %v1449 = vpop.f32.mrb[0].mxu0
    %1450 = vdwg.mxu0
    %1451 = vmatprep.subr.bf16.mxu0 0
    %1452 = vmatpush1.bf16.msra.mxu0 %v1081
    %1453 = vmatprep.subr.bf16.mxu0 0
    %1454 = vmatpush1.bf16.msra.mxu0 %v1082
    %1455 = vmatprep.subr.bf16.mxu0 0
    %1456 = vmatpush1.bf16.msra.mxu0 %v1083
    %1457 = vmatprep.subr.bf16.mxu0 0
    %1458 = vmatpush1.bf16.msra.mxu0 %v1084
    %1459 = vmatprep.subr.bf16.mxu0 0
    %1460 = vmatpush1.bf16.msra.mxu0 %v1085
    %1461 = vmatprep.subr.bf16.mxu0 0
    %1462 = vmatpush1.bf16.msra.mxu0 %v1086
    %1463 = vmatprep.subr.bf16.mxu0 0
    %1464 = vmatpush1.bf16.msra.mxu0 %v1087
    %1465 = vmatprep.subr.bf16.mxu0 0
    %1466 = vmatpush1.bf16.msra.mxu0 %v1088
    %1467 = vmatprep.subr.bf16.mxu0 0
    %1468 = vmatpush1.bf16.msra.mxu0 %v1089
    %1469 = vmatprep.subr.bf16.mxu0 0
    %1470 = vmatpush1.bf16.msra.mxu0 %v1090
    %1471 = vmatprep.subr.bf16.mxu0 0
    %1472 = vmatpush1.bf16.msra.mxu0 %v1091
    %1473 = vmatprep.subr.bf16.mxu0 0
    %1474 = vmatpush1.bf16.msra.mxu0 %v1092
    %1475 = vmatprep.subr.bf16.mxu0 0
    %1476 = vmatpush1.bf16.msra.mxu0 %v1093
    %1477 = vmatprep.subr.bf16.mxu0 0
    %1478 = vmatpush1.bf16.msra.mxu0 %v1094
    %1479 = vmatprep.subr.bf16.mxu0 0
    %1480 = vmatpush1.bf16.msra.mxu0 %v1095
    %1481 = vmatprep.subr.bf16.mxu0 0
    %1482 = vmatpush1.bf16.msra.mxu0 %v1096
    %1483 = vmatprep.mubr.bf16.mxu0 %v132
    %1484 = vmatmul.mubr.bf16.gmra.mrb[0].mxu0 %v131
    %v1485 = vpop.f32.mrb[0].mxu0
    %v1486 = vadd.f32 %v1446, %v1485
    %v1487 = vpop.f32.mrb[0].mxu0
    %v1488 = vpop.f32.mrb[0].mxu0
    %v1489 = vpop.f32.mrb[0].mxu0
    %1490 = vdwg.mxu0
    %1491 = vmatprep.subr.bf16.mxu0 0
    %1492 = vmatpush1.bf16.msra.mxu0 %v1097
    %1493 = vmatprep.subr.bf16.mxu0 0
    %1494 = vmatpush1.bf16.msra.mxu0 %v1098
    %1495 = vmatprep.subr.bf16.mxu0 0
    %1496 = vmatpush1.bf16.msra.mxu0 %v1099
    %1497 = vmatprep.subr.bf16.mxu0 0
    %1498 = vmatpush1.bf16.msra.mxu0 %v1100
    %1499 = vmatprep.subr.bf16.mxu0 0
    %1500 = vmatpush1.bf16.msra.mxu0 %v1101
    %1501 = vmatprep.subr.bf16.mxu0 0
    %1502 = vmatpush1.bf16.msra.mxu0 %v1102
    %1503 = vmatprep.subr.bf16.mxu0 0
    %1504 = vmatpush1.bf16.msra.mxu0 %v1103
    %1505 = vmatprep.subr.bf16.mxu0 0
    %1506 = vmatpush1.bf16.msra.mxu0 %v1104
    %1507 = vmatprep.subr.bf16.mxu0 0
    %1508 = vmatpush1.bf16.msra.mxu0 %v1105
    %1509 = vmatprep.subr.bf16.mxu0 0
    %1510 = vmatpush1.bf16.msra.mxu0 %v1106
    %1511 = vmatprep.subr.bf16.mxu0 0
    %1512 = vmatpush1.bf16.msra.mxu0 %v1107
    %1513 = vmatprep.subr.bf16.mxu0 0
    %1514 = vmatpush1.bf16.msra.mxu0 %v1108
    %1515 = vmatprep.subr.bf16.mxu0 0
    %1516 = vmatpush1.bf16.msra.mxu0 %v1109
    %1517 = vmatprep.subr.bf16.mxu0 0
    %1518 = vmatpush1.bf16.msra.mxu0 %v1110
    %1519 = vmatprep.subr.bf16.mxu0 0
    %1520 = vmatpush1.bf16.msra.mxu0 %v1111
    %1521 = vmatprep.subr.bf16.mxu0 0
    %1522 = vmatpush1.bf16.msra.mxu0 %v1112
    %1523 = vmatprep.mubr.bf16.mxu0 %v134
    %1524 = vmatmul.mubr.bf16.gmra.mrb[0].mxu0 %v133
    %v1525 = vpop.f32.mrb[0].mxu0
    %v1526 = vadd.f32 %v1486, %v1525
    %v1527 = vpop.f32.mrb[0].mxu0
    %v1528 = vpop.f32.mrb[0].mxu0
    %v1529 = vpop.f32.mrb[0].mxu0
    %1530 = vdwg.mxu0
    %1531 = vmatprep.subr.bf16.mxu0 0
    %1532 = vmatpush1.bf16.msra.mxu0 %v1113
    %1533 = vmatprep.subr.bf16.mxu0 0
    %1534 = vmatpush1.bf16.msra.mxu0 %v1114
    %1535 = vmatprep.subr.bf16.mxu0 0
    %1536 = vmatpush1.bf16.msra.mxu0 %v1115
    %1537 = vmatprep.subr.bf16.mxu0 0
    %1538 = vmatpush1.bf16.msra.mxu0 %v1116
    %1539 = vmatprep.subr.bf16.mxu0 0
    %1540 = vmatpush1.bf16.msra.mxu0 %v1117
    %1541 = vmatprep.subr.bf16.mxu0 0
    %1542 = vmatpush1.bf16.msra.mxu0 %v1118
    %1543 = vmatprep.subr.bf16.mxu0 0
    %1544 = vmatpush1.bf16.msra.mxu0 %v1119
    %1545 = vmatprep.subr.bf16.mxu0 0
    %1546 = vmatpush1.bf16.msra.mxu0 %v1120
    %1547 = vmatprep.subr.bf16.mxu0 0
    %1548 = vmatpush1.bf16.msra.mxu0 %v1121
    %1549 = vmatprep.subr.bf16.mxu0 0
    %1550 = vmatpush1.bf16.msra.mxu0 %v1122
    %1551 = vmatprep.subr.bf16.mxu0 0
    %1552 = vmatpush1.bf16.msra.mxu0 %v1123
    %1553 = vmatprep.subr.bf16.mxu0 0
    %1554 = vmatpush1.bf16.msra.mxu0 %v1124
    %1555 = vmatprep.subr.bf16.mxu0 0
    %1556 = vmatpush1.bf16.msra.mxu0 %v1125
    %1557 = vmatprep.subr.bf16.mxu0 0
    %1558 = vmatpush1.bf16.msra.mxu0 %v1126
    %1559 = vmatprep.subr.bf16.mxu0 0
    %1560 = vmatpush1.bf16.msra.mxu0 %v1127
    %1561 = vmatprep.subr.bf16.mxu0 0
    %1562 = vmatpush1.bf16.msra.mxu0 %v1128
    %1563 = vmatprep.mubr.bf16.mxu0 %v136
    %1564 = vmatmul.mubr.bf16.gmra.mrb[0].mxu0 %v135
    %v1565 = vpop.f32.mrb[0].mxu0
    %v1566 = vadd.f32 %v1526, %v1565
    %v1567 = vpop.f32.mrb[0].mxu0
    %v1568 = vpop.f32.mrb[0].mxu0
    %v1569 = vpop.f32.mrb[0].mxu0
    %1570 = vdwg.mxu0
    %1571 = vmatprep.subr.bf16.mxu0 0
    %1572 = vmatpush1.bf16.msra.mxu0 %v1129
    %1573 = vmatprep.subr.bf16.mxu0 0
    %1574 = vmatpush1.bf16.msra.mxu0 %v1130
    %1575 = vmatprep.subr.bf16.mxu0 0
    %1576 = vmatpush1.bf16.msra.mxu0 %v1131
    %1577 = vmatprep.subr.bf16.mxu0 0
    %1578 = vmatpush1.bf16.msra.mxu0 %v1132
    %1579 = vmatprep.subr.bf16.mxu0 0
    %1580 = vmatpush1.bf16.msra.mxu0 %v1133
    %1581 = vmatprep.subr.bf16.mxu0 0
    %1582 = vmatpush1.bf16.msra.mxu0 %v1134
    %1583 = vmatprep.subr.bf16.mxu0 0
    %1584 = vmatpush1.bf16.msra.mxu0 %v1135
    %1585 = vmatprep.subr.bf16.mxu0 0
    %1586 = vmatpush1.bf16.msra.mxu0 %v1136
    %1587 = vmatprep.subr.bf16.mxu0 0
    %1588 = vmatpush1.bf16.msra.mxu0 %v1137
    %1589 = vmatprep.subr.bf16.mxu0 0
    %1590 = vmatpush1.bf16.msra.mxu0 %v1138
    %1591 = vmatprep.subr.bf16.mxu0 0
    %1592 = vmatpush1.bf16.msra.mxu0 %v1139
    %1593 = vmatprep.subr.bf16.mxu0 0
    %1594 = vmatpush1.bf16.msra.mxu0 %v1140
    %1595 = vmatprep.subr.bf16.mxu0 0
    %1596 = vmatpush1.bf16.msra.mxu0 %v1141
    %1597 = vmatprep.subr.bf16.mxu0 0
    %1598 = vmatpush1.bf16.msra.mxu0 %v1142
    %1599 = vmatprep.subr.bf16.mxu0 0
    %1600 = vmatpush1.bf16.msra.mxu0 %v1143
    %1601 = vmatprep.subr.bf16.mxu0 0
    %1602 = vmatpush1.bf16.msra.mxu0 %v1144
    %1603 = vmatprep.mubr.bf16.mxu0 %v138
    %1604 = vmatmul.mubr.bf16.gmra.mrb[0].mxu0 %v137
    %v1605 = vpop.f32.mrb[0].mxu0
    %v1606 = vadd.f32 %v1566, %v1605
    %v1607 = vpop.f32.mrb[0].mxu0
    %v1608 = vpop.f32.mrb[0].mxu0
    %v1609 = vpop.f32.mrb[0].mxu0
    %1610 = vdwg.mxu0
    %1611 = vmatprep.subr.bf16.mxu0 0
    %1612 = vmatpush1.bf16.msra.mxu0 %v1145
    %1613 = vmatprep.subr.bf16.mxu0 0
    %1614 = vmatpush1.bf16.msra.mxu0 %v1146
    %1615 = vmatprep.subr.bf16.mxu0 0
    %1616 = vmatpush1.bf16.msra.mxu0 %v1147
    %1617 = vmatprep.subr.bf16.mxu0 0
    %1618 = vmatpush1.bf16.msra.mxu0 %v1148
    %1619 = vmatprep.subr.bf16.mxu0 0
    %1620 = vmatpush1.bf16.msra.mxu0 %v1149
    %1621 = vmatprep.subr.bf16.mxu0 0
    %1622 = vmatpush1.bf16.msra.mxu0 %v1150
    %1623 = vmatprep.subr.bf16.mxu0 0
    %1624 = vmatpush1.bf16.msra.mxu0 %v1151
    %1625 = vmatprep.subr.bf16.mxu0 0
    %1626 = vmatpush1.bf16.msra.mxu0 %v1152
    %1627 = vmatprep.subr.bf16.mxu0 0
    %1628 = vmatpush1.bf16.msra.mxu0 %v1153
    %1629 = vmatprep.subr.bf16.mxu0 0
    %1630 = vmatpush1.bf16.msra.mxu0 %v1154
    %1631 = vmatprep.subr.bf16.mxu0 0
    %1632 = vmatpush1.bf16.msra.mxu0 %v1155
    %1633 = vmatprep.subr.bf16.mxu0 0
    %1634 = vmatpush1.bf16.msra.mxu0 %v1156
    %1635 = vmatprep.subr.bf16.mxu0 0
    %1636 = vmatpush1.bf16.msra.mxu0 %v1157
    %1637 = vmatprep.subr.bf16.mxu0 0
    %1638 = vmatpush1.bf16.msra.mxu0 %v1158
    %1639 = vmatprep.subr.bf16.mxu0 0
    %1640 = vmatpush1.bf16.msra.mxu0 %v1159
    %1641 = vmatprep.subr.bf16.mxu0 0
    %1642 = vmatpush1.bf16.msra.mxu0 %v1160
    %1643 = vmatprep.mubr.bf16.mxu0 %v140
    %1644 = vmatmul.mubr.bf16.gmra.mrb[0].mxu0 %v139
    %v1645 = vpop.f32.mrb[0].mxu0
    %v1646 = vadd.f32 %v1606, %v1645
    %v1647 = vpop.f32.mrb[0].mxu0
    %v1648 = vpop.f32.mrb[0].mxu0
    %v1649 = vpop.f32.mrb[0].mxu0
    %1650 = vdwg.mxu0
    %1651 = vmatprep.subr.bf16.mxu0 0
    %1652 = vmatpush1.bf16.msra.mxu0 %v1161
    %1653 = vmatprep.subr.bf16.mxu0 0
    %1654 = vmatpush1.bf16.msra.mxu0 %v1162
    %1655 = vmatprep.subr.bf16.mxu0 0
    %1656 = vmatpush1.bf16.msra.mxu0 %v1163
    %1657 = vmatprep.subr.bf16.mxu0 0
    %1658 = vmatpush1.bf16.msra.mxu0 %v1164
    %1659 = vmatprep.subr.bf16.mxu0 0
    %1660 = vmatpush1.bf16.msra.mxu0 %v1165
    %1661 = vmatprep.subr.bf16.mxu0 0
    %1662 = vmatpush1.bf16.msra.mxu0 %v1166
    %1663 = vmatprep.subr.bf16.mxu0 0
    %1664 = vmatpush1.bf16.msra.mxu0 %v1167
    %1665 = vmatprep.subr.bf16.mxu0 0
    %1666 = vmatpush1.bf16.msra.mxu0 %v1168
    %1667 = vmatprep.subr.bf16.mxu0 0
    %1668 = vmatpush1.bf16.msra.mxu0 %v1169
    %1669 = vmatprep.subr.bf16.mxu0 0
    %1670 = vmatpush1.bf16.msra.mxu0 %v1170
    %1671 = vmatprep.subr.bf16.mxu0 0
    %1672 = vmatpush1.bf16.msra.mxu0 %v1171
    %1673 = vmatprep.subr.bf16.mxu0 0
    %1674 = vmatpush1.bf16.msra.mxu0 %v1172
    %1675 = vmatprep.subr.bf16.mxu0 0
    %1676 = vmatpush1.bf16.msra.mxu0 %v1173
    %1677 = vmatprep.subr.bf16.mxu0 0
    %1678 = vmatpush1.bf16.msra.mxu0 %v1174
    %1679 = vmatprep.subr.bf16.mxu0 0
    %1680 = vmatpush1.bf16.msra.mxu0 %v1175
    %1681 = vmatprep.subr.bf16.mxu0 0
    %1682 = vmatpush1.bf16.msra.mxu0 %v1176
    %1683 = vmatprep.mubr.bf16.mxu0 %v142
    %1684 = vmatmul.mubr.bf16.gmra.mrb[0].mxu0 %v141
    %v1685 = vpop.f32.mrb[0].mxu0
    %v1686 = vadd.f32 %v1646, %v1685
    %v1687 = vpop.f32.mrb[0].mxu0
    %v1688 = vpop.f32.mrb[0].mxu0
    %v1689 = vpop.f32.mrb[0].mxu0
    %1690 = vdwg.mxu0
    %1691 = vmatprep.subr.bf16.mxu0 0
    %1692 = vmatpush1.bf16.msra.mxu0 %v1177
    %1693 = vmatprep.subr.bf16.mxu0 0
    %1694 = vmatpush1.bf16.msra.mxu0 %v1178
    %1695 = vmatprep.subr.bf16.mxu0 0
    %1696 = vmatpush1.bf16.msra.mxu0 %v1179
    %1697 = vmatprep.subr.bf16.mxu0 0
    %1698 = vmatpush1.bf16.msra.mxu0 0
    %1699 = vmatprep.subr.bf16.mxu0 0
    %1700 = vmatpush1.bf16.msra.mxu0 0
    %1701 = vmatprep.subr.bf16.mxu0 0
    %1702 = vmatpush1.bf16.msra.mxu0 0
    %1703 = vmatprep.subr.bf16.mxu0 0
    %1704 = vmatpush1.bf16.msra.mxu0 0
    %1705 = vmatprep.subr.bf16.mxu0 0
    %1706 = vmatpush1.bf16.msra.mxu0 0
    %1707 = vmatprep.subr.bf16.mxu0 0
    %1708 = vmatpush1.bf16.msra.mxu0 0
    %1709 = vmatprep.subr.bf16.mxu0 0
    %1710 = vmatpush1.bf16.msra.mxu0 0
    %1711 = vmatprep.subr.bf16.mxu0 0
    %1712 = vmatpush1.bf16.msra.mxu0 0
    %1713 = vmatprep.subr.bf16.mxu0 0
    %1714 = vmatpush1.bf16.msra.mxu0 0
    %1715 = vmatprep.subr.bf16.mxu0 0
    %1716 = vmatpush1.bf16.msra.mxu0 0
    %1717 = vmatprep.subr.bf16.mxu0 0
    %1718 = vmatpush1.bf16.msra.mxu0 0
    %1719 = vmatprep.subr.bf16.mxu0 0
    %1720 = vmatpush1.bf16.msra.mxu0 0
    %1721 = vmatprep.subr.bf16.mxu0 0
    %1722 = vmatpush1.bf16.msra.mxu0 0
    %1723 = vmatprep.mubr.bf16.mxu0 0
    %1724 = vmatmul.mubr.bf16.gmra.mrb[0].mxu0 %v1329
    %v1725 = vpop.f32.mrb[0].mxu0
    %v1726 = vadd.f32 %v1686, %v1725
    %v1727 = vpop.f32.mrb[0].mxu0
    %v1728 = vpop.f32.mrb[0].mxu0
    %v1729 = vpop.f32.mrb[0].mxu0
    %1730 = vdwg.mxu0
    %v1731 = vmax.f32 %v1726, 0.0
    %v1732 = vpack.c.bf16 %v1731, %v1731
    %1733 = vst [vmem:[#allocation11] sm:$0xf] %v1732
    %v1734 = vld [vmem:[#allocation7] sm:$0xf]
    %v1735 = vld [vmem:[#allocation7 + $0x4] sm:$0xf]
    %v1736 = vld [vmem:[#allocation7 + $0x8] sm:$0xf]
    %v1737 = vld [vmem:[#allocation7 + $0xc] sm:$0xf]
    %v1738 = vld [vmem:[#allocation7 + $0x10] sm:$0xf]
    %v1739 = vld [vmem:[#allocation7 + $0x14] sm:$0xf]
    %v1740 = vld [vmem:[#allocation7 + $0x18] sm:$0xf]
    %v1741 = vld [vmem:[#allocation7 + $0x1c] sm:$0xf]
    %v1742 = vld [vmem:[#allocation7 + $0x20] sm:$0xf]
    %v1743 = vld [vmem:[#allocation7 + $0x24] sm:$0xf]
    %v1744 = vld [vmem:[#allocation7 + $0x28] sm:$0xf]
    %v1745 = vld [vmem:[#allocation7 + $0x2c] sm:$0xf]
    %v1746 = vld [vmem:[#allocation7 + $0x30] sm:$0xf]
    %v1747 = vld [vmem:[#allocation7 + $0x34] sm:$0xf]
    %v1748 = vld [vmem:[#allocation7 + $0x38] sm:$0xf]
    %v1749 = vld [vmem:[#allocation7 + $0x3c] sm:$0xf]
    %v1750 = vld [vmem:[%s4] sm:$0x1]
    %v1752 = vlaneseq
    %v1753 = vshrl.u32 %v1752, 7
    %v1754 = vsub.s32 0, %v1753
    %v1755 = vrot.slane %v1750, %v1754
    %v1773 = vunpack.c.l.b16 %v1734
    %v1774 = vunpack.c.l.b16 %v1735
    %v1775 = vunpack.c.l.b16 %v1736
    %v1776 = vunpack.c.l.b16 %v1737
    %v1777 = vunpack.c.l.b16 %v1738
    %v1778 = vunpack.c.l.b16 %v1739
    %v1779 = vunpack.c.l.b16 %v1740
    %v1780 = vunpack.c.l.b16 %v1741
    %v1781 = vunpack.c.l.b16 %v1742
    %v1782 = vunpack.c.l.b16 %v1743
    %v1783 = vunpack.c.l.b16 %v1744
    %v1784 = vunpack.c.l.b16 %v1745
    %v1785 = vunpack.c.l.b16 %v1746
    %v1786 = vunpack.c.l.b16 %v1747
    %v1787 = vunpack.c.l.b16 %v1748
    %v1788 = vunpack.c.l.b16 %v1749
    %v1789 = vpack.c.b16 %v1774, %v1773
    %v1790 = vpack.c.b16 %v1776, %v1775
    %v1791 = vpack.c.b16 %v1778, %v1777
    %v1792 = vpack.c.b16 %v1780, %v1779
    %v1793 = vpack.c.b16 %v1782, %v1781
    %v1794 = vpack.c.b16 %v1784, %v1783
    %v1795 = vpack.c.b16 %v1786, %v1785
    %v1796 = vpack.c.b16 %v1788, %v1787
    %1805 = vmatprep.subr.bf16.mxu0 0
    %1806 = vmatpush1.bf16.msra.mxu0 %v1789
    %1807 = vmatprep.subr.bf16.mxu0 0
    %1808 = vmatpush1.bf16.msra.mxu0 %v1790
    %1809 = vmatprep.subr.bf16.mxu0 0
    %1810 = vmatpush1.bf16.msra.mxu0 %v1791
    %1811 = vmatprep.subr.bf16.mxu0 0
    %1812 = vmatpush1.bf16.msra.mxu0 %v1792
    %1813 = vmatprep.subr.bf16.mxu0 0
    %1814 = vmatpush1.bf16.msra.mxu0 %v1793
    %1815 = vmatprep.subr.bf16.mxu0 0
    %1816 = vmatpush1.bf16.msra.mxu0 %v1794
    %1817 = vmatprep.subr.bf16.mxu0 0
    %1818 = vmatpush1.bf16.msra.mxu0 %v1795
    %1819 = vmatprep.subr.bf16.mxu0 0
    %1820 = vmatpush1.bf16.msra.mxu0 %v1796
    %1821 = vmatprep.subr.bf16.mxu0 0
    %1822 = vmatpush1.bf16.msra.mxu0 0
    %1823 = vmatprep.subr.bf16.mxu0 0
    %1824 = vmatpush1.bf16.msra.mxu0 0
    %1825 = vmatprep.subr.bf16.mxu0 0
    %1826 = vmatpush1.bf16.msra.mxu0 0
    %1827 = vmatprep.subr.bf16.mxu0 0
    %1828 = vmatpush1.bf16.msra.mxu0 0
    %1829 = vmatprep.subr.bf16.mxu0 0
    %1830 = vmatpush1.bf16.msra.mxu0 0
    %1831 = vmatprep.subr.bf16.mxu0 0
    %1832 = vmatpush1.bf16.msra.mxu0 0
    %1833 = vmatprep.subr.bf16.mxu0 0
    %1834 = vmatpush1.bf16.msra.mxu0 0
    %1835 = vmatprep.subr.bf16.mxu0 0
    %1836 = vmatpush1.bf16.msra.mxu0 0
    %1837 = vmatprep.mubr.bf16.mxu0 0
    %1838 = vmatmul.mubr.bf16.gmra.mrb[0].mxu0 %v1732
    %v1839 = vpop.f32.mrb[0].mxu0
    %v1840 = vadd.f32 %v1755, %v1839
    %v1841 = vpop.f32.mrb[0].mxu0
    %v1842 = vpop.f32.mrb[0].mxu0
    %v1843 = vpop.f32.mrb[0].mxu0
    %1844 = vdwg.mxu0
    %v1845 = vmax.f32 %v1840, 0.0
    %v1846 = vpack.c.bf16 %v1845, %v1845
    %1847 = vst [vmem:[#allocation12] sm:$0xf] %v1846
    %v1848 = vld [vmem:[#allocation8] sm:$0xf]
    %v1849 = vld [vmem:[#allocation8 + $0x4] sm:$0xf]
    %v1850 = vld [vmem:[#allocation8 + $0x8] sm:$0xf]
    %v1851 = vld [vmem:[#allocation8 + $0xc] sm:$0xf]
    %v1852 = vld [vmem:[#allocation8 + $0x10] sm:$0xf]
    %v1853 = vld [vmem:[#allocation8 + $0x14] sm:$0xf]
    %v1854 = vld [vmem:[#allocation8 + $0x18] sm:$0xf]
    %v1855 = vld [vmem:[#allocation8 + $0x1c] sm:$0xf]
    %v1856 = vld [vmem:[#allocation8 + $0x20] sm:$0xf]
    %v1857 = vld [vmem:[#allocation8 + $0x24] sm:$0xf]
    %v1858 = vld [vmem:[#allocation8 + $0x28] sm:$0xf]
    %v1859 = vld [vmem:[#allocation8 + $0x2c] sm:$0xf]
    %v1860 = vld [vmem:[#allocation8 + $0x30] sm:$0xf]
    %v1861 = vld [vmem:[#allocation8 + $0x34] sm:$0xf]
    %v1862 = vld [vmem:[#allocation8 + $0x38] sm:$0xf]
    %v1863 = vld [vmem:[#allocation8 + $0x3c] sm:$0xf]
    %v1864 = vld [vmem:[%s6] sm:$0x1]
    %v1866 = vlaneseq
    %v1867 = vshrl.u32 %v1866, 7
    %v1868 = vsub.s32 0, %v1867
    %v1869 = vrot.slane %v1864, %v1868
    %v1887 = vunpack.c.l.b16 %v1848
    %v1888 = vunpack.c.l.b16 %v1849
    %v1889 = vunpack.c.l.b16 %v1850
    %v1890 = vunpack.c.l.b16 %v1851
    %v1891 = vunpack.c.l.b16 %v1852
    %v1892 = vunpack.c.l.b16 %v1853
    %v1893 = vunpack.c.l.b16 %v1854
    %v1894 = vunpack.c.l.b16 %v1855
    %v1895 = vunpack.c.l.b16 %v1856
    %v1896 = vunpack.c.l.b16 %v1857
    %v1897 = vunpack.c.l.b16 %v1858
    %v1898 = vunpack.c.l.b16 %v1859
    %v1899 = vunpack.c.l.b16 %v1860
    %v1900 = vunpack.c.l.b16 %v1861
    %v1901 = vunpack.c.l.b16 %v1862
    %v1902 = vunpack.c.l.b16 %v1863
    %v1903 = vpack.c.b16 %v1888, %v1887
    %v1904 = vpack.c.b16 %v1890, %v1889
    %v1905 = vpack.c.b16 %v1892, %v1891
    %v1906 = vpack.c.b16 %v1894, %v1893
    %v1907 = vpack.c.b16 %v1896, %v1895
    %v1908 = vpack.c.b16 %v1898, %v1897
    %v1909 = vpack.c.b16 %v1900, %v1899
    %v1910 = vpack.c.b16 %v1902, %v1901
    %1919 = vmatprep.subr.bf16.mxu0 0
    %1920 = vmatpush1.bf16.msra.mxu0 %v1903
    %1921 = vmatprep.subr.bf16.mxu0 0
    %1922 = vmatpush1.bf16.msra.mxu0 %v1904
    %1923 = vmatprep.subr.bf16.mxu0 0
    %1924 = vmatpush1.bf16.msra.mxu0 %v1905
    %1925 = vmatprep.subr.bf16.mxu0 0
    %1926 = vmatpush1.bf16.msra.mxu0 %v1906
    %1927 = vmatprep.subr.bf16.mxu0 0
    %1928 = vmatpush1.bf16.msra.mxu0 %v1907
    %1929 = vmatprep.subr.bf16.mxu0 0
    %1930 = vmatpush1.bf16.msra.mxu0 %v1908
    %1931 = vmatprep.subr.bf16.mxu0 0
    %1932 = vmatpush1.bf16.msra.mxu0 %v1909
    %1933 = vmatprep.subr.bf16.mxu0 0
    %1934 = vmatpush1.bf16.msra.mxu0 %v1910
    %1935 = vmatprep.subr.bf16.mxu0 0
    %1936 = vmatpush1.bf16.msra.mxu0 0
    %1937 = vmatprep.subr.bf16.mxu0 0
    %1938 = vmatpush1.bf16.msra.mxu0 0
    %1939 = vmatprep.subr.bf16.mxu0 0
    %1940 = vmatpush1.bf16.msra.mxu0 0
    %1941 = vmatprep.subr.bf16.mxu0 0
    %1942 = vmatpush1.bf16.msra.mxu0 0
    %1943 = vmatprep.subr.bf16.mxu0 0
    %1944 = vmatpush1.bf16.msra.mxu0 0
    %1945 = vmatprep.subr.bf16.mxu0 0
    %1946 = vmatpush1.bf16.msra.mxu0 0
    %1947 = vmatprep.subr.bf16.mxu0 0
    %1948 = vmatpush1.bf16.msra.mxu0 0
    %1949 = vmatprep.subr.bf16.mxu0 0
    %1950 = vmatpush1.bf16.msra.mxu0 0
    %1951 = vmatprep.mubr.bf16.mxu0 0
    %1952 = vmatmul.mubr.bf16.gmra.mrb[0].mxu0 %v1846
    %v1953 = vpop.f32.mrb[0].mxu0
    %v1954 = vadd.f32 %v1869, %v1953
    %v1955 = vpop.f32.mrb[0].mxu0
    %v1956 = vpop.f32.mrb[0].mxu0
    %v1957 = vpop.f32.mrb[0].mxu0
    %1958 = vdwg.mxu0
    %v1959 = vmax.f32 %v1954, 0.0
    %v1960 = vpack.c.bf16 %v1959, %v1959
    %1961 = vst [vmem:[#allocation14] sm:$0xf] %v1960
    %v1962 = vld [vmem:[#allocation10] sm:$0xf]
    %v1963 = vld [vmem:[#allocation10 + $0x4] sm:$0xf]
    %v1964 = vld [vmem:[#allocation10 + $0x8] sm:$0xf]
    %v1965 = vld [vmem:[#allocation10 + $0xc] sm:$0xf]
    %v1966 = vld [vmem:[#allocation10 + $0x10] sm:$0xf]
    %v1967 = vld [vmem:[#allocation10 + $0x14] sm:$0xf]
    %v1968 = vld [vmem:[#allocation10 + $0x18] sm:$0xf]
    %v1969 = vld [vmem:[#allocation10 + $0x1c] sm:$0xf]
    %v1970 = vld [vmem:[#allocation10 + $0x20] sm:$0xf]
    %v1971 = vld [vmem:[#allocation10 + $0x24] sm:$0xf]
    %v1972 = vld [vmem:[#allocation10 + $0x28] sm:$0xf]
    %v1973 = vld [vmem:[#allocation10 + $0x2c] sm:$0xf]
    %v1974 = vld [vmem:[#allocation10 + $0x30] sm:$0xf]
    %v1975 = vld [vmem:[#allocation10 + $0x34] sm:$0xf]
    %v1976 = vld [vmem:[#allocation10 + $0x38] sm:$0xf]
    %v1977 = vld [vmem:[#allocation10 + $0x3c] sm:$0xf]
    %v1978 = vld [vmem:[%s8] sm:$0x1]
    %v1980 = vlaneseq
    %v1981 = vshrl.u32 %v1980, 7
    %v1982 = vsub.s32 0, %v1981
    %v1983 = vrot.slane %v1978, %v1982
    %v2001 = vunpack.c.l.b16 %v1962
    %v2002 = vunpack.c.l.b16 %v1963
    %v2003 = vunpack.c.l.b16 %v1964
    %v2004 = vunpack.c.l.b16 %v1965
    %v2005 = vunpack.c.l.b16 %v1966
    %v2006 = vunpack.c.l.b16 %v1967
    %v2007 = vunpack.c.l.b16 %v1968
    %v2008 = vunpack.c.l.b16 %v1969
    %v2009 = vunpack.c.l.b16 %v1970
    %v2010 = vunpack.c.l.b16 %v1971
    %v2011 = vunpack.c.l.b16 %v1972
    %v2012 = vunpack.c.l.b16 %v1973
    %v2013 = vunpack.c.l.b16 %v1974
    %v2014 = vunpack.c.l.b16 %v1975
    %v2015 = vunpack.c.l.b16 %v1976
    %v2016 = vunpack.c.l.b16 %v1977
    %v2017 = vpack.c.b16 %v2002, %v2001
    %v2018 = vpack.c.b16 %v2004, %v2003
    %v2019 = vpack.c.b16 %v2006, %v2005
    %v2020 = vpack.c.b16 %v2008, %v2007
    %v2021 = vpack.c.b16 %v2010, %v2009
    %v2022 = vpack.c.b16 %v2012, %v2011
    %v2023 = vpack.c.b16 %v2014, %v2013
    %v2024 = vpack.c.b16 %v2016, %v2015
    %2033 = vmatprep.subr.bf16.mxu0 0
    %2034 = vmatpush1.bf16.msra.mxu0 %v2017
    %2035 = vmatprep.subr.bf16.mxu0 0
    %2036 = vmatpush1.bf16.msra.mxu0 %v2018
    %2037 = vmatprep.subr.bf16.mxu0 0
    %2038 = vmatpush1.bf16.msra.mxu0 %v2019
    %2039 = vmatprep.subr.bf16.mxu0 0
    %2040 = vmatpush1.bf16.msra.mxu0 %v2020
    %2041 = vmatprep.subr.bf16.mxu0 0
    %2042 = vmatpush1.bf16.msra.mxu0 %v2021
    %2043 = vmatprep.subr.bf16.mxu0 0
    %2044 = vmatpush1.bf16.msra.mxu0 %v2022
    %2045 = vmatprep.subr.bf16.mxu0 0
    %2046 = vmatpush1.bf16.msra.mxu0 %v2023
    %2047 = vmatprep.subr.bf16.mxu0 0
    %2048 = vmatpush1.bf16.msra.mxu0 %v2024
    %2049 = vmatprep.subr.bf16.mxu0 0
    %2050 = vmatpush1.bf16.msra.mxu0 0
    %2051 = vmatprep.subr.bf16.mxu0 0
    %2052 = vmatpush1.bf16.msra.mxu0 0
    %2053 = vmatprep.subr.bf16.mxu0 0
    %2054 = vmatpush1.bf16.msra.mxu0 0
    %2055 = vmatprep.subr.bf16.mxu0 0
    %2056 = vmatpush1.bf16.msra.mxu0 0
    %2057 = vmatprep.subr.bf16.mxu0 0
    %2058 = vmatpush1.bf16.msra.mxu0 0
    %2059 = vmatprep.subr.bf16.mxu0 0
    %2060 = vmatpush1.bf16.msra.mxu0 0
    %2061 = vmatprep.subr.bf16.mxu0 0
    %2062 = vmatpush1.bf16.msra.mxu0 0
    %2063 = vmatprep.subr.bf16.mxu0 0
    %2064 = vmatpush1.bf16.msra.mxu0 0
    %2065 = vmatprep.mubr.bf16.mxu0 0
    %2066 = vmatmul.mubr.bf16.gmra.mrb[0].mxu0 %v1960
    %v2067 = vpop.f32.mrb[0].mxu0
    %v2068 = vadd.f32 %v1983, %v2067
    %v2069 = vpop.f32.mrb[0].mxu0
    %v2070 = vpop.f32.mrb[0].mxu0
    %v2071 = vpop.f32.mrb[0].mxu0
    %2072 = vdwg.mxu0
    %2073 = vst [vmem:[#allocation15] sm:$0xff] %v2068
    // Predicated region
    $region58: #{tpu_custom_call.1} parent=1 // pred_check
      _
    $region59: #{tpu_custom_call.1} parent=1 // pred_check_branch
      %2075 = sbr.rel (0) target = $region61
    $region60: #{tpu_custom_call.1} parent=1 // pred_region
      %s2077 = ssub.s32 64, 64
      %2078 = vsyncadd [#allocation4], %s2077
      %s2080 = sshll.u32 [#allocation11], 4
      %s2081 = int_to_ptr.vmem [resolvable:$true] %s2080
      %2083 = dma.vmem_to_hbm [thread:$0]  %s2081, 64, %s9, [#allocation4]
    $region61: #{tpu_custom_call.1} parent=1 // pred_fallthru
      _
    // Predicated region
    $region62: #{tpu_custom_call.1} parent=1 // pred_check
      _
    $region63: #{tpu_custom_call.1} parent=1 // pred_check_branch
      %2085 = sbr.rel (0) target = $region65
    $region64: #{tpu_custom_call.1} parent=1 // pred_region
      %s2087 = ssub.s32 64, 64
      %2088 = vsyncadd [#allocation13], %s2087
      %s2090 = sshll.u32 [#allocation12], 4
      %s2091 = int_to_ptr.vmem [resolvable:$true] %s2090
      %2093 = dma.vmem_to_hbm [thread:$0]  %s2091, 64, %s10, [#allocation13]
    $region65: #{tpu_custom_call.1} parent=1 // pred_fallthru
      _
    // Predicated region
    $region66: #{tpu_custom_call.1} parent=1 // pred_check
      _
    $region67: #{tpu_custom_call.1} parent=1 // pred_check_branch
      %2095 = sbr.rel (0) target = $region69
    $region68: #{tpu_custom_call.1} parent=1 // pred_region
      %s2097 = ssub.s32 64, 64
      %2098 = vsyncadd [#allocation13], %s2097
      %s2100 = sshll.u32 [#allocation14], 4
      %s2101 = int_to_ptr.vmem [resolvable:$true] %s2100
      %2103 = dma.vmem_to_hbm [thread:$0]  %s2101, 64, %s11, [#allocation13]
    $region69: #{tpu_custom_call.1} parent=1 // pred_fallthru
      _
    // Predicated region
    $region70: #{tpu_custom_call.1} parent=1 // pred_check
      _
    $region71: #{tpu_custom_call.1} parent=1 // pred_check_branch
      %2105 = sbr.rel (0) target = $region73
    $region72: #{tpu_custom_call.1} parent=1 // pred_region
      %s2107 = ssub.s32 128, 128
      %2108 = vsyncadd [#allocation16], %s2107
      %s2110 = sshll.u32 [#allocation15], 4
      %s2111 = int_to_ptr.vmem [resolvable:$true] %s2110
      %2113 = dma.vmem_to_hbm [thread:$0]  %s2111, 128, %s12, [#allocation16]
    $region73: #{tpu_custom_call.1} parent=1 // pred_fallthru
      _
    // Predicated region
    $region74: #{tpu_custom_call.1} parent=1 // pred_check
      _
    $region75: #{tpu_custom_call.1} parent=1 // pred_check_branch
      %2115 = sbr.rel (0) target = $region77
    $region76: #{tpu_custom_call.1} parent=1 // pred_region
      %2116 = dma.done [#allocation4], 64
    $region77: #{tpu_custom_call.1} parent=1 // pred_fallthru
      _
    // Predicated region
    $region78: #{tpu_custom_call.1} parent=1 // pred_check
      _
    $region79: #{tpu_custom_call.1} parent=1 // pred_check_branch
      %2118 = sbr.rel (0) target = $region81
    $region80: #{tpu_custom_call.1} parent=1 // pred_region
      %2119 = dma.done [#allocation13], 64
    $region81: #{tpu_custom_call.1} parent=1 // pred_fallthru
      _
    // Predicated region
    $region82: #{tpu_custom_call.1} parent=1 // pred_check
      _
    $region83: #{tpu_custom_call.1} parent=1 // pred_check_branch
      %2121 = sbr.rel (0) target = $region85
    $region84: #{tpu_custom_call.1} parent=1 // pred_region
      %2122 = dma.done [#allocation13], 64
    $region85: #{tpu_custom_call.1} parent=1 // pred_fallthru
      _
    // Predicated region
    $region86: #{tpu_custom_call.1} parent=1 // pred_check
      _
    $region87: #{tpu_custom_call.1} parent=1 // pred_check_branch
      %2124 = sbr.rel (0) target = $region89
    $region88: #{tpu_custom_call.1} parent=1 // pred_region
      %2125 = dma.done [#allocation16], 128
    $region89: #{tpu_custom_call.1} parent=1 // pred_fallthru
      _
    %2126 = vsyncpa [#allocation3], 1
    %2127 = vsyncpa [#allocation6], 1
    %2128 = vsyncpa [#allocation9], 1
    %2129 = vsyncpa [#allocation4], 1
    %2130 = vsyncpa [#allocation13], 1
    %2131 = vsyncpa [#allocation16], 1

</llo_original>
